<compile_context>
chip_gen: v6e
topology: v6e:2x2x1
jax: 0.10.0
libtpu: 0.0.40
codegen_flags: <defaults>
</compile_context>

<pallas_src>
import functools

import numpy as np

import jax
import jax.numpy as jnp
from jax.experimental import pallas as pl
from jax.experimental.pallas import tpu as pltpu


def _phase_offsets(K, P):
    """Folded tap offsets per upsample phase: d(a, k) = floor((a + k - P) / 2)."""
    offs = [[(a + k - P) // 2 for k in range(K)] for a in (0, 1)]
    dmin = [min(o) for o in offs]
    dmax = [max(o) for o in offs]
    return offs, dmin, dmax


def _pick_row_tile(hh, max_tile=8):
    """Largest multiple-of-8 divisor of hh <= max_tile (else hh itself)."""
    if hh <= max_tile:
        return hh
    cand = (max_tile // 8) * 8
    while cand >= 8:
        if hh % cand == 0:
            return cand
        cand -= 8
    return hh


@functools.partial(jax.jit, static_argnames=("padding",))
def upblock_forward(x_nchw, w_oihw, bias, gamma, beta, padding=0):
    """UpBlock forward. x_nchw: (N, Cin, H, W) -> (N, Cout, 2H+2P-K+1, 2W+2P-K+1)."""
    del bias  # Conv bias cancels exactly in training-mode BatchNorm (y - mean).
    N, Cin, H, W = x_nchw.shape
    Cout, _, K, Kw = w_oihw.shape
    P = padding
    assert K == Kw and K % 2 == 1, "odd square kernels only"
    # TODO(synk): even kernel sizes need a slightly different phase fold.

    Ho = 2 * H + 2 * P - K + 1
    Wo = 2 * W + 2 * P - K + 1
    Hh, Wh = Ho // 2, Wo // 2
    Kf = (K + 1) // 2                       # folded taps per phase (K odd)

    r_offs, r_min, r_max = _phase_offsets(K, P)
    c_offs, c_min, c_max = _phase_offsets(K, P)

    pad_top = max(0, -r_min[0])
    pad_bot = max(0, (Hh - 1) + r_max[1] - (H - 1))
    pad_lft = max(0, -c_min[0])
    pad_rgt = max(0, (Wh - 1) + c_max[1] - (W - 1))
    Hp = H + pad_top + pad_bot
    Wp = W + pad_lft + pad_rgt
    roff = (r_min[0] + pad_top, r_min[1] + pad_top)     # padded row offset per phase
    coff = (c_min[0] + pad_lft, c_min[1] + pad_lft)

    WPC = Wp * Cin                  # input lane width, row-major (col, cin)
    LANES = 2 * Wh * Cout           # output lane width (col-phase, col, cout)

    # ---- fold the KxK taps into per-(row-phase, col-phase) Kf x Kf kernels ----
    w_hwio = jnp.transpose(w_oihw, (2, 3, 1, 0)).astype(jnp.float32)  # (K,K,Ci,Co)
    wf = jnp.zeros((2, 2, Kf, Kf, Cin, Cout), jnp.float32)
    for a in (0, 1):
        for b in (0, 1):
            for kh in range(K):
                for kw_ in range(K):
                    r = r_offs[a][kh] - r_min[a]
                    c = c_offs[b][kw_] - c_min[b]
                    wf = wf.at[a, b, r, c].add(w_hwio[kh, kw_])

    # ---- band the column taps / column phases into (WPC, LANES) matmul weights ----
    # TODO(synk): for very wide images tile the width too (banded weights grow O(W^2)).
    band_masks = {}
    for b in (0, 1):
        for c in range(Kf):
            m = np.zeros((Wp, 2 * Wh), np.float32)
            for j in range(Wh):
                m[j + coff[b] + c, b * Wh + j] = 1.0
            band_masks[(b, c)] = jnp.asarray(m)
    wb_rows = []
    for a in (0, 1):
        taps = []
        for r in range(Kf):
            band = jnp.zeros((WPC, LANES), jnp.float32)
            for b in (0, 1):
                for c in range(Kf):
                    band = band + jnp.kron(band_masks[(b, c)], wf[a, b, r, c])
            taps.append(band)
        wb_rows.append(jnp.stack(taps))
    wb = jnp.stack(wb_rows)                               # (2, Kf, WPC, LANES)

    # lane -> channel fold matrix for the in-kernel stats matmuls
    sel = jnp.tile(jnp.eye(Cout, dtype=jnp.float32), (2 * Wh, 1))   # (LANES, Cout)

    # ---- input prep: NCHW -> padded NHWC, lanes carry (col, cin) ----
    x_nhwc = jnp.transpose(x_nchw, (0, 2, 3, 1)).astype(jnp.float32)
    x_pad = jnp.pad(x_nhwc, ((0, 0), (pad_top, pad_bot), (pad_lft, pad_rgt), (0, 0)))
    x_flat = x_pad.reshape(N, Hp, WPC)

    TR = _pick_row_tile(Hh)
    T = Hh // TR

    # ---------------- pass 1: phase conv + per-tile channel stats ----------------
    def conv_phase_kernel(x_ref, wb_ref, sel_ref, y_ref, st_ref):
        # x_ref : (Hp, WPC)            padded input image (resident per batch index)
        # wb_ref: (2, Kf, WPC, LANES)  banded phase weights
        # sel_ref: (LANES, Cout)       lane -> channel fold
        # y_ref : (2, TR, LANES)       conv out [row-phase, row, (col-phase, col, cout)]
        # st_ref: (2, Cout)            per-tile [sum, sum-of-squares] per channel
        t = pl.program_id(1)
        row0 = t * TR
        ones_row = jnp.ones((1, TR), jnp.float32)
        ch_sum = jnp.zeros((1, Cout), jnp.float32)
        ch_sq = jnp.zeros((1, Cout), jnp.float32)
        for a in range(2):                      # row phase (static unroll)
            acc = jnp.zeros((TR, LANES), jnp.float32)
            for r in range(Kf):                 # folded row taps (static unroll)
                rows = x_ref[pl.ds(row0 + roff[a] + r, TR), :]
                acc = acc + jnp.dot(rows, wb_ref[a, r],
                                    preferred_element_type=jnp.float32)
            y_ref[a] = acc
            # channel stats ride the MXU: sublane-sum then lane->channel fold
            col_sum = jnp.dot(ones_row, acc, preferred_element_type=jnp.float32)
            col_sq = jnp.dot(ones_row, acc * acc, preferred_element_type=jnp.float32)
            ch_sum = ch_sum + jnp.dot(col_sum, sel_ref[...],
                                      preferred_element_type=jnp.float32)
            ch_sq = ch_sq + jnp.dot(col_sq, sel_ref[...],
                                    preferred_element_type=jnp.float32)
        st_ref[...] = jnp.concatenate([ch_sum, ch_sq], axis=0)

    y_conv, stats = pl.pallas_call(
        conv_phase_kernel,
        out_shape=(jax.ShapeDtypeStruct((2, N, Hh, LANES), jnp.float32),
                   jax.ShapeDtypeStruct((N, T, 2, Cout), jnp.float32)),
        grid=(N, T),
        in_specs=[
            pl.BlockSpec((None, Hp, WPC), lambda n, t: (n, 0, 0)),
            pl.BlockSpec((2, Kf, WPC, LANES), lambda n, t: (0, 0, 0, 0)),
            pl.BlockSpec((LANES, Cout), lambda n, t: (0, 0)),
        ],
        out_specs=(
            pl.BlockSpec((2, None, TR, LANES), lambda n, t: (0, n, t, 0)),
            pl.BlockSpec((None, None, 2, Cout), lambda n, t: (n, t, 0, 0)),
        ),
        compiler_params=pltpu.CompilerParams(
            dimension_semantics=("parallel", "parallel"),
            vmem_limit_bytes=32 * 1024 * 1024),
    )(x_flat, wb, sel)

    # ---- tiny stats finalisation (biased variance, training-mode BN, eps=1e-5) ----
    tot = jnp.sum(stats, axis=(0, 1))                     # (2, Cout)
    cnt = float(N * Ho * Wo)
    mean = tot[0] / cnt
    var = jnp.maximum(tot[1] / cnt - mean * mean, 0.0)
    scale = gamma.astype(jnp.float32) * jax.lax.rsqrt(var + 1e-5)
    shift = beta.astype(jnp.float32) - mean * scale
    scale_l = jnp.tile(scale, 2 * Wh).reshape(1, LANES)   # lane-aligned per-channel
    shift_l = jnp.tile(shift, 2 * Wh).reshape(1, LANES)

    # ---------------- pass 2: BN apply + ReLU (lane-dense, tiled) ----------------
    def bn_relu_kernel(y_ref, sc_ref, sh_ref, o_ref):
        o_ref[...] = jnp.maximum(y_ref[...] * sc_ref[...] + sh_ref[...], 0.0)

    z = pl.pallas_call(
        bn_relu_kernel,
        out_shape=jax.ShapeDtypeStruct((2, N, Hh, LANES), jnp.float32),
        grid=(N, T),
        in_specs=[
            pl.BlockSpec((2, None, TR, LANES), lambda n, t: (0, n, t, 0)),
            pl.BlockSpec((1, LANES), lambda n, t: (0, 0)),
            pl.BlockSpec((1, LANES), lambda n, t: (0, 0)),
        ],
        out_specs=pl.BlockSpec((2, None, TR, LANES), lambda n, t: (0, n, t, 0)),
        compiler_params=pltpu.CompilerParams(
            dimension_semantics=("parallel", "parallel"),
            vmem_limit_bytes=32 * 1024 * 1024),
    )(y_conv, scale_l, shift_l)

    # ---- de-interleave the 4 phases -> NCHW (single XLA transpose) ----
    z6 = z.reshape(2, N, Hh, 2, Wh, Cout)                 # (a, n, i, b, j, c)
    out = jnp.transpose(z6, (1, 5, 2, 0, 4, 3)).reshape(N, Cout, Ho, Wo)
    return out.astype(x_nchw.dtype)


def _reference_forward(x_nchw, w_oihw, bias, gamma, beta, padding):
    """Plain-JAX reference matching the PyTorch forward (training-mode BN)."""
    xu = jnp.repeat(jnp.repeat(x_nchw, 2, axis=2), 2, axis=3)
    conv = jax.lax.conv_general_dilated(
        xu.astype(jnp.float32), w_oihw.astype(jnp.float32),
        window_strides=(1, 1), padding=[(padding, padding), (padding, padding)],
        dimension_numbers=("NCHW", "OIHW", "NCHW"),
        precision=jax.lax.Precision.HIGHEST)
    conv = conv + bias.reshape(1, -1, 1, 1)
    mean = conv.mean(axis=(0, 2, 3), keepdims=True)
    var = jnp.mean(jnp.square(conv - mean), axis=(0, 2, 3), keepdims=True)
    y = (conv - mean) * jax.lax.rsqrt(var + 1e-5)
    y = y * gamma.reshape(1, -1, 1, 1) + beta.reshape(1, -1, 1, 1)
    return jnp.maximum(y, 0.0)


if __name__ == "__main__":
    # UpBlock(in_channels=4, out_channels=8, kernel_size=3, padding=1) on (2,4,16,16).
    N, C_IN, H, W = 2, 4, 16, 16
    C_OUT, K, PAD = 8, 3, 1

    key = jax.random.PRNGKey(0)
    kx, kw, kb, kg, kbeta = jax.random.split(key, 5)

    x = jax.random.normal(kx, (N, C_IN, H, W), dtype=jnp.float32)
    conv_w = 0.1 * jax.random.normal(kw, (C_OUT, C_IN, K, K), dtype=jnp.float32)
    conv_b = 0.1 * jax.random.normal(kb, (C_OUT,), dtype=jnp.float32)
    bn_gamma = 1.0 + 0.1 * jax.random.normal(kg, (C_OUT,), dtype=jnp.float32)
    bn_beta = 0.1 * jax.random.normal(kbeta, (C_OUT,), dtype=jnp.float32)

    out = upblock_forward(x, conv_w, conv_b, bn_gamma, bn_beta, padding=PAD)
    out = jax.block_until_ready(out)

    ref = _reference_forward(x, conv_w, conv_b, bn_gamma, bn_beta, PAD)
    ref = jax.block_until_ready(ref)

    assert out.shape == (N, C_OUT, 2 * H, 2 * W), out.shape
    assert jnp.allclose(out, ref, atol=1e-4, rtol=1e-4), (
        float(jnp.max(jnp.abs(out - ref))))

    print("KERNEL_OK")
</pallas_src>

<mosaic_0001>
module attributes {stable_mosaic.version = 11 : i64} {
  func.func @conv_phase_kernel(%arg0: i32, %arg1: i32, %arg2: memref<1x18x72xf32, #tpu.memory_space<vmem>>, %arg3: memref<2x2x72x256xf32, #tpu.memory_space<vmem>>, %arg4: memref<256x8xf32, #tpu.memory_space<vmem>>, %arg5: memref<2x1x8x256xf32, #tpu.memory_space<vmem>>, %arg6: memref<1x1x2x8xf32, #tpu.memory_space<vmem>>) attributes {dimension_semantics = [#tpu.dimension_semantics<parallel>, #tpu.dimension_semantics<parallel>], iteration_bounds = array<i64: 2, 2>, scalar_prefetch = 0 : i64, scratch_operands = 0 : i64, tpu.core_type = #tpu.core_type<tc>, window_params = [{transform_indices = @transform_0, window_bounds = array<i64: 1, 18, 72>}, {pipeline_mode = #tpu.pipeline_mode<synchronous>, transform_indices = @transform_1, window_bounds = array<i64: 2, 2, 72, 256>}, {pipeline_mode = #tpu.pipeline_mode<synchronous>, transform_indices = @transform_2, window_bounds = array<i64: 256, 8>}, {transform_indices = @transform_3, window_bounds = array<i64: 2, 1, 8, 256>}, {transform_indices = @transform_4, window_bounds = array<i64: 1, 1, 2, 8>}]} {
    %c8_i32 = arith.constant 8 : i32
    %0 = arith.muli %arg1, %c8_i32 : i32
    %cst = arith.constant 1.000000e+00 : f32
    %1 = vector.broadcast %cst : f32 to vector<1x8xf32>
    %cst_0 = arith.constant 0.000000e+00 : f32
    %2 = vector.broadcast %cst_0 : f32 to vector<1x8xf32>
    %cst_1 = arith.constant 0.000000e+00 : f32
    %3 = vector.broadcast %cst_1 : f32 to vector<1x8xf32>
    %cst_2 = arith.constant 0.000000e+00 : f32
    %4 = vector.broadcast %cst_2 : f32 to vector<8x256xf32>
    %c0_i32 = arith.constant 0 : i32
    %5 = arith.addi %0, %c0_i32 : i32
    %c0_i32_3 = arith.constant 0 : i32
    %6 = arith.addi %5, %c0_i32_3 : i32
    %c0 = arith.constant 0 : index
    %7 = arith.index_cast %6 : i32 to index
    %c0_4 = arith.constant 0 : index
    %8 = vector.load %arg2[%c0, %7, %c0_4] : memref<1x18x72xf32, #tpu.memory_space<vmem>>, vector<1x8x72xf32>
    %9 = vector.shape_cast %8 : vector<1x8x72xf32> to vector<8x72xf32>
    %c0_5 = arith.constant 0 : index
    %c0_6 = arith.constant 0 : index
    %c0_7 = arith.constant 0 : index
    %c0_8 = arith.constant 0 : index
    %10 = vector.load %arg3[%c0_5, %c0_6, %c0_7, %c0_8] : memref<2x2x72x256xf32, #tpu.memory_space<vmem>>, vector<1x1x72x256xf32>
    %11 = vector.shape_cast %10 : vector<1x1x72x256xf32> to vector<72x256xf32>
    %cst_9 = arith.constant dense<0.000000e+00> : vector<8x256xf32>
    %12 = tpu.matmul %9, %11, %cst_9 {dimension_numbers = #tpu.dot_dimension_numbers<[1], [0], [0], [1], [0, 0, 1, 1], [], []>} : vector<8x72xf32>, vector<72x256xf32>, vector<8x256xf32> -> vector<8x256xf32>
    %13 = arith.addf %4, %12 : vector<8x256xf32>
    %c0_i32_10 = arith.constant 0 : i32
    %14 = arith.addi %0, %c0_i32_10 : i32
    %c1_i32 = arith.constant 1 : i32
    %15 = arith.addi %14, %c1_i32 : i32
    %c0_11 = arith.constant 0 : index
    %16 = arith.index_cast %15 : i32 to index
    %c0_12 = arith.constant 0 : index
    %17 = vector.load %arg2[%c0_11, %16, %c0_12] : memref<1x18x72xf32, #tpu.memory_space<vmem>>, vector<1x8x72xf32>
    %18 = vector.shape_cast %17 : vector<1x8x72xf32> to vector<8x72xf32>
    %c0_13 = arith.constant 0 : index
    %c1 = arith.constant 1 : index
    %c0_14 = arith.constant 0 : index
    %c0_15 = arith.constant 0 : index
    %19 = vector.load %arg3[%c0_13, %c1, %c0_14, %c0_15] : memref<2x2x72x256xf32, #tpu.memory_space<vmem>>, vector<1x1x72x256xf32>
    %20 = vector.shape_cast %19 : vector<1x1x72x256xf32> to vector<72x256xf32>
    %cst_16 = arith.constant dense<0.000000e+00> : vector<8x256xf32>
    %21 = tpu.matmul %18, %20, %cst_16 {dimension_numbers = #tpu.dot_dimension_numbers<[1], [0], [0], [1], [0, 0, 1, 1], [], []>} : vector<8x72xf32>, vector<72x256xf32>, vector<8x256xf32> -> vector<8x256xf32>
    %22 = arith.addf %13, %21 : vector<8x256xf32>
    %c0_17 = arith.constant 0 : index
    %c0_18 = arith.constant 0 : index
    %c0_19 = arith.constant 0 : index
    %c0_20 = arith.constant 0 : index
    %23 = vector.load %arg5[%c0_17, %c0_18, %c0_19, %c0_20] : memref<2x1x8x256xf32, #tpu.memory_space<vmem>>, vector<1x1x8x256xf32>
    %24 = vector.shape_cast %23 : vector<1x1x8x256xf32> to vector<8x256xf32>
    %25 = vector.shape_cast %22 : vector<8x256xf32> to vector<1x1x8x256xf32>
    tpu.vector_store %arg5[%c0_17, %c0_18, %c0_19, %c0_20], %25 {strides = array<i32>} : memref<2x1x8x256xf32, #tpu.memory_space<vmem>>, vector<1x1x8x256xf32>,
    %cst_21 = arith.constant dense<0.000000e+00> : vector<1x256xf32>
    %26 = tpu.matmul %1, %22, %cst_21 {dimension_numbers = #tpu.dot_dimension_numbers<[1], [0], [0], [1], [0, 0, 1, 1], [], []>} : vector<1x8xf32>, vector<8x256xf32>, vector<1x256xf32> -> vector<1x256xf32>
    %27 = arith.mulf %22, %22 : vector<8x256xf32>
    %cst_22 = arith.constant dense<0.000000e+00> : vector<1x256xf32>
    %28 = tpu.matmul %1, %27, %cst_22 {dimension_numbers = #tpu.dot_dimension_numbers<[1], [0], [0], [1], [0, 0, 1, 1], [], []>} : vector<1x8xf32>, vector<8x256xf32>, vector<1x256xf32> -> vector<1x256xf32>
    %c0_23 = arith.constant 0 : index
    %c0_24 = arith.constant 0 : index
    %29 = vector.load %arg4[%c0_23, %c0_24] : memref<256x8xf32, #tpu.memory_space<vmem>>, vector<256x8xf32>
    %cst_25 = arith.constant dense<0.000000e+00> : vector<1x8xf32>
    %30 = tpu.matmul %26, %29, %cst_25 {dimension_numbers = #tpu.dot_dimension_numbers<[1], [0], [0], [1], [0, 0, 1, 1], [], []>} : vector<1x256xf32>, vector<256x8xf32>, vector<1x8xf32> -> vector<1x8xf32>
    %31 = arith.addf %2, %30 : vector<1x8xf32>
    %c0_26 = arith.constant 0 : index
    %c0_27 = arith.constant 0 : index
    %32 = vector.load %arg4[%c0_26, %c0_27] : memref<256x8xf32, #tpu.memory_space<vmem>>, vector<256x8xf32>
    %cst_28 = arith.constant dense<0.000000e+00> : vector<1x8xf32>
    %33 = tpu.matmul %28, %32, %cst_28 {dimension_numbers = #tpu.dot_dimension_numbers<[1], [0], [0], [1], [0, 0, 1, 1], [], []>} : vector<1x256xf32>, vector<256x8xf32>, vector<1x8xf32> -> vector<1x8xf32>
    %34 = arith.addf %3, %33 : vector<1x8xf32>
    %cst_29 = arith.constant 0.000000e+00 : f32
    %35 = vector.broadcast %cst_29 : f32 to vector<8x256xf32>
    %c1_i32_30 = arith.constant 1 : i32
    %36 = arith.addi %0, %c1_i32_30 : i32
    %c0_i32_31 = arith.constant 0 : i32
    %37 = arith.addi %36, %c0_i32_31 : i32
    %c0_32 = arith.constant 0 : index
    %38 = arith.index_cast %37 : i32 to index
    %c0_33 = arith.constant 0 : index
    %39 = vector.load %arg2[%c0_32, %38, %c0_33] : memref<1x18x72xf32, #tpu.memory_space<vmem>>, vector<1x8x72xf32>
    %40 = vector.shape_cast %39 : vector<1x8x72xf32> to vector<8x72xf32>
    %c1_34 = arith.constant 1 : index
    %c0_35 = arith.constant 0 : index
    %c0_36 = arith.constant 0 : index
    %c0_37 = arith.constant 0 : index
    %41 = vector.load %arg3[%c1_34, %c0_35, %c0_36, %c0_37] : memref<2x2x72x256xf32, #tpu.memory_space<vmem>>, vector<1x1x72x256xf32>
    %42 = vector.shape_cast %41 : vector<1x1x72x256xf32> to vector<72x256xf32>
    %cst_38 = arith.constant dense<0.000000e+00> : vector<8x256xf32>
    %43 = tpu.matmul %40, %42, %cst_38 {dimension_numbers = #tpu.dot_dimension_numbers<[1], [0], [0], [1], [0, 0, 1, 1], [], []>} : vector<8x72xf32>, vector<72x256xf32>, vector<8x256xf32> -> vector<8x256xf32>
    %44 = arith.addf %35, %43 : vector<8x256xf32>
    %c1_i32_39 = arith.constant 1 : i32
    %45 = arith.addi %0, %c1_i32_39 : i32
    %c1_i32_40 = arith.constant 1 : i32
    %46 = arith.addi %45, %c1_i32_40 : i32
    %c0_41 = arith.constant 0 : index
    %47 = arith.index_cast %46 : i32 to index
    %c0_42 = arith.constant 0 : index
    %48 = vector.load %arg2[%c0_41, %47, %c0_42] : memref<1x18x72xf32, #tpu.memory_space<vmem>>, vector<1x8x72xf32>
    %49 = vector.shape_cast %48 : vector<1x8x72xf32> to vector<8x72xf32>
    %c1_43 = arith.constant 1 : index
    %c1_44 = arith.constant 1 : index
    %c0_45 = arith.constant 0 : index
    %c0_46 = arith.constant 0 : index
    %50 = vector.load %arg3[%c1_43, %c1_44, %c0_45, %c0_46] : memref<2x2x72x256xf32, #tpu.memory_space<vmem>>, vector<1x1x72x256xf32>
    %51 = vector.shape_cast %50 : vector<1x1x72x256xf32> to vector<72x256xf32>
    %cst_47 = arith.constant dense<0.000000e+00> : vector<8x256xf32>
    %52 = tpu.matmul %49, %51, %cst_47 {dimension_numbers = #tpu.dot_dimension_numbers<[1], [0], [0], [1], [0, 0, 1, 1], [], []>} : vector<8x72xf32>, vector<72x256xf32>, vector<8x256xf32> -> vector<8x256xf32>
    %53 = arith.addf %44, %52 : vector<8x256xf32>
    %c1_48 = arith.constant 1 : index
    %c0_49 = arith.constant 0 : index
    %c0_50 = arith.constant 0 : index
    %c0_51 = arith.constant 0 : index
    %54 = vector.load %arg5[%c1_48, %c0_49, %c0_50, %c0_51] : memref<2x1x8x256xf32, #tpu.memory_space<vmem>>, vector<1x1x8x256xf32>
    %55 = vector.shape_cast %54 : vector<1x1x8x256xf32> to vector<8x256xf32>
    %56 = vector.shape_cast %53 : vector<8x256xf32> to vector<1x1x8x256xf32>
    tpu.vector_store %arg5[%c1_48, %c0_49, %c0_50, %c0_51], %56 {strides = array<i32>} : memref<2x1x8x256xf32, #tpu.memory_space<vmem>>, vector<1x1x8x256xf32>,
    %cst_52 = arith.constant dense<0.000000e+00> : vector<1x256xf32>
    %57 = tpu.matmul %1, %53, %cst_52 {dimension_numbers = #tpu.dot_dimension_numbers<[1], [0], [0], [1], [0, 0, 1, 1], [], []>} : vector<1x8xf32>, vector<8x256xf32>, vector<1x256xf32> -> vector<1x256xf32>
    %58 = arith.mulf %53, %53 : vector<8x256xf32>
    %cst_53 = arith.constant dense<0.000000e+00> : vector<1x256xf32>
    %59 = tpu.matmul %1, %58, %cst_53 {dimension_numbers = #tpu.dot_dimension_numbers<[1], [0], [0], [1], [0, 0, 1, 1], [], []>} : vector<1x8xf32>, vector<8x256xf32>, vector<1x256xf32> -> vector<1x256xf32>
    %c0_54 = arith.constant 0 : index
    %c0_55 = arith.constant 0 : index
    %60 = vector.load %arg4[%c0_54, %c0_55] : memref<256x8xf32, #tpu.memory_space<vmem>>, vector<256x8xf32>
    %cst_56 = arith.constant dense<0.000000e+00> : vector<1x8xf32>
    %61 = tpu.matmul %57, %60, %cst_56 {dimension_numbers = #tpu.dot_dimension_numbers<[1], [0], [0], [1], [0, 0, 1, 1], [], []>} : vector<1x256xf32>, vector<256x8xf32>, vector<1x8xf32> -> vector<1x8xf32>
    %62 = arith.addf %31, %61 : vector<1x8xf32>
    %c0_57 = arith.constant 0 : index
    %c0_58 = arith.constant 0 : index
    %63 = vector.load %arg4[%c0_57, %c0_58] : memref<256x8xf32, #tpu.memory_space<vmem>>, vector<256x8xf32>
    %cst_59 = arith.constant dense<0.000000e+00> : vector<1x8xf32>
    %64 = tpu.matmul %59, %63, %cst_59 {dimension_numbers = #tpu.dot_dimension_numbers<[1], [0], [0], [1], [0, 0, 1, 1], [], []>} : vector<1x256xf32>, vector<256x8xf32>, vector<1x8xf32> -> vector<1x8xf32>
    %65 = arith.addf %34, %64 : vector<1x8xf32>
    %66 = tpu.concatenate %62, %65 in 0 : vector<1x8xf32>, vector<1x8xf32> -> vector<2x8xf32>
    %c0_60 = arith.constant 0 : index
    %c0_61 = arith.constant 0 : index
    %c0_62 = arith.constant 0 : index
    %c0_63 = arith.constant 0 : index
    %67 = vector.load %arg6[%c0_60, %c0_61, %c0_62, %c0_63] : memref<1x1x2x8xf32, #tpu.memory_space<vmem>>, vector<1x1x2x8xf32>
    %68 = vector.shape_cast %67 : vector<1x1x2x8xf32> to vector<2x8xf32>
    %69 = vector.shape_cast %66 : vector<2x8xf32> to vector<1x1x2x8xf32>
    tpu.vector_store %arg6[%c0_60, %c0_61, %c0_62, %c0_63], %69 {strides = array<i32>} : memref<1x1x2x8xf32, #tpu.memory_space<vmem>>, vector<1x1x2x8xf32>,
    return
  }
  func.func @transform_0(%arg0: i32, %arg1: i32) -> (i32, i32, i32) {
    %c0_i32 = arith.constant 0 : i32
    %c0_i32_0 = arith.constant 0 : i32
    %c0_i32_1 = arith.constant 0 : i32
    return %arg0, %c0_i32, %c0_i32_0 : i32, i32, i32
  }
  func.func @transform_1(%arg0: i32, %arg1: i32) -> (i32, i32, i32, i32) {
    %c0_i32 = arith.constant 0 : i32
    %c0_i32_0 = arith.constant 0 : i32
    %c0_i32_1 = arith.constant 0 : i32
    %c0_i32_2 = arith.constant 0 : i32
    %c0_i32_3 = arith.constant 0 : i32
    return %c0_i32, %c0_i32_0, %c0_i32_1, %c0_i32_2 : i32, i32, i32, i32
  }
  func.func @transform_2(%arg0: i32, %arg1: i32) -> (i32, i32) {
    %c0_i32 = arith.constant 0 : i32
    %c0_i32_0 = arith.constant 0 : i32
    %c0_i32_1 = arith.constant 0 : i32
    return %c0_i32, %c0_i32_0 : i32, i32
  }
  func.func @transform_3(%arg0: i32, %arg1: i32) -> (i32, i32, i32, i32) {
    %c0_i32 = arith.constant 0 : i32
    %c0_i32_0 = arith.constant 0 : i32
    %c0_i32_1 = arith.constant 0 : i32
    return %c0_i32, %arg0, %arg1, %c0_i32_0 : i32, i32, i32, i32
  }
  func.func @transform_4(%arg0: i32, %arg1: i32) -> (i32, i32, i32, i32) {
    %c0_i32 = arith.constant 0 : i32
    %c0_i32_0 = arith.constant 0 : i32
    %c0_i32_1 = arith.constant 0 : i32
    return %arg0, %arg1, %c0_i32, %c0_i32_0 : i32, i32, i32, i32
  }
}

module attributes {stable_mosaic.version = 11 : i64} {
  func.func @bn_relu_kernel(%arg0: i32, %arg1: i32, %arg2: memref<2x1x8x256xf32, #tpu.memory_space<vmem>>, %arg3: memref<1x256xf32, #tpu.memory_space<vmem>>, %arg4: memref<1x256xf32, #tpu.memory_space<vmem>>, %arg5: memref<2x1x8x256xf32, #tpu.memory_space<vmem>>) attributes {dimension_semantics = [#tpu.dimension_semantics<parallel>, #tpu.dimension_semantics<parallel>], iteration_bounds = array<i64: 2, 2>, scalar_prefetch = 0 : i64, scratch_operands = 0 : i64, tpu.core_type = #tpu.core_type<tc>, window_params = [{transform_indices = @transform_0, window_bounds = array<i64: 2, 1, 8, 256>}, {pipeline_mode = #tpu.pipeline_mode<synchronous>, transform_indices = @transform_1, window_bounds = array<i64: 1, 256>}, {pipeline_mode = #tpu.pipeline_mode<synchronous>, transform_indices = @transform_2, window_bounds = array<i64: 1, 256>}, {transform_indices = @transform_3, window_bounds = array<i64: 2, 1, 8, 256>}]} {
    %c0 = arith.constant 0 : index
    %c0_0 = arith.constant 0 : index
    %c0_1 = arith.constant 0 : index
    %c0_2 = arith.constant 0 : index
    %0 = vector.load %arg2[%c0, %c0_0, %c0_1, %c0_2] : memref<2x1x8x256xf32, #tpu.memory_space<vmem>>, vector<2x1x8x256xf32>
    %1 = vector.shape_cast %0 : vector<2x1x8x256xf32> to vector<2x8x256xf32>
    %c0_3 = arith.constant 0 : index
    %c0_4 = arith.constant 0 : index
    %2 = vector.load %arg3[%c0_3, %c0_4] : memref<1x256xf32, #tpu.memory_space<vmem>>, vector<1x256xf32>
    %3 = vector.shape_cast %2 : vector<1x256xf32> to vector<1x1x256xf32>
    %4 = vector.broadcast %3 : vector<1x1x256xf32> to vector<2x8x256xf32>
    %5 = arith.mulf %1, %4 : vector<2x8x256xf32>
    %c0_5 = arith.constant 0 : index
    %c0_6 = arith.constant 0 : index
    %6 = vector.load %arg4[%c0_5, %c0_6] : memref<1x256xf32, #tpu.memory_space<vmem>>, vector<1x256xf32>
    %7 = vector.shape_cast %6 : vector<1x256xf32> to vector<1x1x256xf32>
    %8 = vector.broadcast %7 : vector<1x1x256xf32> to vector<2x8x256xf32>
    %9 = arith.addf %5, %8 : vector<2x8x256xf32>
    %cst = arith.constant 0.000000e+00 : f32
    %10 = vector.broadcast %cst : f32 to vector<2x8x256xf32>
    %11 = arith.maximumf %9, %10 : vector<2x8x256xf32>
    %c0_7 = arith.constant 0 : index
    %c0_8 = arith.constant 0 : index
    %c0_9 = arith.constant 0 : index
    %c0_10 = arith.constant 0 : index
    %12 = vector.load %arg5[%c0_7, %c0_8, %c0_9, %c0_10] : memref<2x1x8x256xf32, #tpu.memory_space<vmem>>, vector<2x1x8x256xf32>
    %13 = vector.shape_cast %12 : vector<2x1x8x256xf32> to vector<2x8x256xf32>
    %14 = vector.shape_cast %11 : vector<2x8x256xf32> to vector<2x1x8x256xf32>
    tpu.vector_store %arg5[%c0_7, %c0_8, %c0_9, %c0_10], %14 {strides = array<i32>} : memref<2x1x8x256xf32, #tpu.memory_space<vmem>>, vector<2x1x8x256xf32>,
    return
  }
  func.func @transform_0(%arg0: i32, %arg1: i32) -> (i32, i32, i32, i32) {
    %c0_i32 = arith.constant 0 : i32
    %c0_i32_0 = arith.constant 0 : i32
    %c0_i32_1 = arith.constant 0 : i32
    return %c0_i32, %arg0, %arg1, %c0_i32_0 : i32, i32, i32, i32
  }
  func.func @transform_1(%arg0: i32, %arg1: i32) -> (i32, i32) {
    %c0_i32 = arith.constant 0 : i32
    %c0_i32_0 = arith.constant 0 : i32
    %c0_i32_1 = arith.constant 0 : i32
    return %c0_i32, %c0_i32_0 : i32, i32
  }
  func.func @transform_2(%arg0: i32, %arg1: i32) -> (i32, i32) {
    %c0_i32 = arith.constant 0 : i32
    %c0_i32_0 = arith.constant 0 : i32
    %c0_i32_1 = arith.constant 0 : i32
    return %c0_i32, %c0_i32_0 : i32, i32
  }
  func.func @transform_3(%arg0: i32, %arg1: i32) -> (i32, i32, i32, i32) {
    %c0_i32 = arith.constant 0 : i32
    %c0_i32_0 = arith.constant 0 : i32
    %c0_i32_1 = arith.constant 0 : i32
    return %c0_i32, %arg0, %arg1, %c0_i32_0 : i32, i32, i32, i32
  }
}

</mosaic_0001>

<llo_original>
// kernel: upblock_forward.2
$region0: #{upblock_forward.2}
  #allocation0 [shape = 'u32[]', space=smem, size = 0x4, offset = 0x4, fixed_abs, tag = 'smem constant byte address 0x4 - core index']
  #allocation1 [shape = 'u32[144,128]{1,0:T(1,128)}', space=vmem, size = 0x12000, scoped, tag = 'internal scratch']
  %s0 = inlined_call_operand.vmem [shape: f32[2,18,72], index: 0, kind: input, shape index: {}]
  %s1 = inlined_call_operand.vmem [shape: f32[2,2,72,256], index: 1, kind: input, shape index: {}]
  %s2 = inlined_call_operand.vmem [shape: f32[256,8], index: 2, kind: input, shape index: {}]
  %s3 = inlined_call_operand.vmem [shape: f32[2,2,16,256], index: 3, kind: output, shape index: {0}]
  %s4 = inlined_call_operand.vmem [shape: f32[2,2,2,8], index: 4, kind: output, shape index: {1}]
  %5 = xla_tuple %s3, %s4
  %s6 = sld [smem:[#allocation0]]
  $region72: #{upblock_forward.2} parent=0
    _
  %s8 = ssub.s32 1, %s6
  %s9 = scalar_select 0, %s8, %s6
  $region1: #{upblock_forward.2} parent=0
    #allocation2 [shape = 'u8[32768]{0}', space=vmem, size = 0x8000, scoped, tag = 'output window, operand 0']
    loop: start=0, step=1, limit=6
    $region2: #{upblock_forward.2} parent=1 // loop_pre_header
      _
    $region3: #{upblock_forward.2} parent=1 // loop_header
      %s11 = sphi 0, %s15
      %p12 = scmp.ge.s32.totalorder %s11, 6
      %s18 = sphi 0, %s30
      %s19 = sphi 0, %s26
      %s20 = sphi 0, %s18
      %s21 = sphi 0, %s19
      %s22 = sphi 0, %s20
      %s23 = sphi 0, %s21
      %s33 = sphi 0, %s35
      %s36 = sphi 0, %s33
      %s37 = sphi 0, %s36
      %s53 = sphi 0, %s37
      %s57 = sphi 0, %s57
      %s59 = sphi 0, %s57
      %s60 = sphi 0, %s59
      %s74 = sphi 0, %s60
      %s78 = sphi 0, %s78
      %s80 = sphi 0, %s78
      %s81 = sphi 0, %s80
      %s95 = sphi 0, %s81
      %s103 = sphi 0, %s105
      %s106 = sphi 0, %s103
      %s107 = sphi 0, %s106
      %s123 = sphi 0, %s107
      %s131 = sphi 0, %s133
      %s134 = sphi 0, %s131
      %s135 = sphi 0, %s134
      %s151 = sphi 0, %s135
    $region4: #{upblock_forward.2} parent=1 // loop_header_branch
      %14 = sbr.rel (%p12) target = $region8
    $region5: #{upblock_forward.2} parent=1 // loop_body
      %s16 = ssub.s32 %s11, 1
      %s17 = ssub.s32 %s11, 2
      %s24 = sadd.s32 1, %s19
      %p25 = scmp.ge.s32.totalorder %s24, 2
      %s26 = scalar_select %p25, 0, %s24
      %s27 = sadd.s32 1, %s18
      %s28 = scalar_select %p25, %s27, %s18
      %p29 = scmp.ge.s32.totalorder %s28, 2
      %s30 = scalar_select %p29, 0, %s28
      %s31 = ssub.s32 %s18, %s30
      %p32 = scmp.eq.s32.totalorder %s31, 0
      %s34 = sadd.s32 %s33, 1
      %s35 = scalar_select %p32, %s33, %s34
      %p38 = pneg %p32
      %p39 = scmp.eq.s32.totalorder %s11, 3
      %p40 = por %p38, %p39
      %p41 = scmp.ne.s32.totalorder %s33, %s36
      %p42 = scmp.eq.s32.totalorder %s11, 0
      %p43 = por %p41, %p42
      %p44 = scmp.ne.s32.totalorder %s33, %s36
      %p45 = scmp.eq.s32.totalorder %s16, 3
      %p46 = por %p44, %p45
      %p47 = scmp.ne.s32.totalorder %s36, %s37
      %p48 = scmp.eq.s32.totalorder %s16, 0
      %p49 = por %p47, %p48
      %p50 = scmp.ne.s32.totalorder %s36, %s37
      %p51 = scmp.eq.s32.totalorder %s17, 3
      %p52 = por %p50, %p51
      %p54 = scmp.ne.s32.totalorder %s37, %s53
      %p55 = scmp.eq.s32.totalorder %s17, 0
      %p56 = por %p54, %p55
      %s58 = sadd.s32 %s57, 1
      %p61 = scmp.eq.s32.totalorder %s11, 3
      %p62 = scmp.ne.s32.totalorder %s57, %s59
      %p63 = scmp.eq.s32.totalorder %s11, 0
      %p64 = por %p62, %p63
      %p65 = scmp.ne.s32.totalorder %s57, %s59
      %p66 = scmp.eq.s32.totalorder %s16, 3
      %p67 = por %p65, %p66
      %p68 = scmp.ne.s32.totalorder %s59, %s60
      %p69 = scmp.eq.s32.totalorder %s16, 0
      %p70 = por %p68, %p69
      %p71 = scmp.ne.s32.totalorder %s59, %s60
      %p72 = scmp.eq.s32.totalorder %s17, 3
      %p73 = por %p71, %p72
      %p75 = scmp.ne.s32.totalorder %s60, %s74
      %p76 = scmp.eq.s32.totalorder %s17, 0
      %p77 = por %p75, %p76
      %s79 = sadd.s32 %s78, 1
      %p82 = scmp.eq.s32.totalorder %s11, 3
      %p83 = scmp.ne.s32.totalorder %s78, %s80
      %p84 = scmp.eq.s32.totalorder %s11, 0
      %p85 = por %p83, %p84
      %p86 = scmp.ne.s32.totalorder %s78, %s80
      %p87 = scmp.eq.s32.totalorder %s16, 3
      %p88 = por %p86, %p87
      %p89 = scmp.ne.s32.totalorder %s80, %s81
      %p90 = scmp.eq.s32.totalorder %s16, 0
      %p91 = por %p89, %p90
      %p92 = scmp.ne.s32.totalorder %s80, %s81
      %p93 = scmp.eq.s32.totalorder %s17, 3
      %p94 = por %p92, %p93
      %p96 = scmp.ne.s32.totalorder %s81, %s95
      %p97 = scmp.eq.s32.totalorder %s17, 0
      %p98 = por %p96, %p97
      %s99 = ssub.s32 %s18, %s30
      %s100 = ssub.s32 %s19, %s26
      %s101 = sor.u32 %s99, %s100
      %p102 = scmp.eq.s32.totalorder %s101, 0
      %s104 = sadd.s32 %s103, 1
      %s105 = scalar_select %p102, %s103, %s104
      %p108 = pneg %p102
      %p109 = scmp.eq.s32.totalorder %s11, 3
      %p110 = por %p108, %p109
      %p111 = scmp.ne.s32.totalorder %s103, %s106
      %p112 = scmp.eq.s32.totalorder %s11, 0
      %p113 = por %p111, %p112
      %p114 = scmp.ne.s32.totalorder %s103, %s106
      %p115 = scmp.eq.s32.totalorder %s16, 3
      %p116 = por %p114, %p115
      %p117 = scmp.ne.s32.totalorder %s106, %s107
      %p118 = scmp.eq.s32.totalorder %s16, 0
      %p119 = por %p117, %p118
      %p120 = scmp.ne.s32.totalorder %s106, %s107
      %p121 = scmp.eq.s32.totalorder %s17, 3
      %p122 = por %p120, %p121
      %p124 = scmp.ne.s32.totalorder %s107, %s123
      %p125 = scmp.eq.s32.totalorder %s17, 0
      %p126 = por %p124, %p125
      %s127 = ssub.s32 %s18, %s30
      %s128 = ssub.s32 %s19, %s26
      %s129 = sor.u32 %s127, %s128
      %p130 = scmp.eq.s32.totalorder %s129, 0
      %s132 = sadd.s32 %s131, 1
      %s133 = scalar_select %p130, %s131, %s132
      %p136 = pneg %p130
      %p137 = scmp.eq.s32.totalorder %s11, 3
      %p138 = por %p136, %p137
      %p139 = scmp.ne.s32.totalorder %s131, %s134
      %p140 = scmp.eq.s32.totalorder %s11, 0
      %p141 = por %p139, %p140
      %p142 = scmp.ne.s32.totalorder %s131, %s134
      %p143 = scmp.eq.s32.totalorder %s16, 3
      %p144 = por %p142, %p143
      %p145 = scmp.ne.s32.totalorder %s134, %s135
      %p146 = scmp.eq.s32.totalorder %s16, 0
      %p147 = por %p145, %p146
      %p148 = scmp.ne.s32.totalorder %s134, %s135
      %p149 = scmp.eq.s32.totalorder %s17, 3
      %p150 = por %p148, %p149
      %p152 = scmp.ne.s32.totalorder %s135, %s151
      %p153 = scmp.eq.s32.totalorder %s17, 0
      %p154 = por %p152, %p153
      %p155 = scmp.le.s32.totalorder 1, %s11
      %p156 = scmp.lt.s32.totalorder %s11, 5
      %p157 = pnand %p155, %p156
      %p158 = pneg %p157
      // Predicated region
      $region9: #{upblock_forward.2} parent=5 // pred_check
        _
      $region10: #{upblock_forward.2} parent=5 // pred_check_branch
        %160 = sbr.rel (%p157) target = $region12
      $region11: #{upblock_forward.2} parent=5 // pred_region
        %s161 = ssub.s32 %s11, 1
        // Predicated region
        $region13: #{upblock_forward.2} parent=11 // pred_check
          %p162 = pneg %p70
        $region14: #{upblock_forward.2} parent=11 // pred_check_branch
          %164 = sbr.rel (%p162) target = $region16
        $region15: #{upblock_forward.2} parent=11 // pred_region
          _
        $region16: #{upblock_forward.2} parent=11 // pred_fallthru
          _
        // Predicated region
        $region17: #{upblock_forward.2} parent=11 // pred_check
          %p165 = pneg %p91
        $region18: #{upblock_forward.2} parent=11 // pred_check_branch
          %167 = sbr.rel (%p165) target = $region20
        $region19: #{upblock_forward.2} parent=11 // pred_region
          _
        $region20: #{upblock_forward.2} parent=11 // pred_fallthru
          _
      $region12: #{upblock_forward.2} parent=5 // pred_fallthru
        _
      %p168 = scmp.lt.s32.totalorder %s11, 4
      // Predicated region
      $region21: #{upblock_forward.2} parent=5 // pred_check
        %p169 = pneg %p168
      $region22: #{upblock_forward.2} parent=5 // pred_check_branch
        %171 = sbr.rel (%p169) target = $region24
      $region23: #{upblock_forward.2} parent=5 // pred_region
        // Predicated region
        $region25: #{upblock_forward.2} parent=23 // pred_check
          %p172 = pneg %p43
        $region26: #{upblock_forward.2} parent=23 // pred_check_branch
          %174 = sbr.rel (%p172) target = $region28
        $region27: #{upblock_forward.2} parent=23 // pred_region
          %p175 = scmp.lt.s32.totalorder %s18, 1
          %s176 = scalar_select %p175, %s18, 1
          %s177 = smul.addr %s176, 3
          %s178 = smul.addr %s177, 8
          %s179 = scalar_lea.vmem %s0, %s178
        $region28: #{upblock_forward.2} parent=23 // pred_fallthru
          _
      $region24: #{upblock_forward.2} parent=5 // pred_fallthru
        _
      %p180 = scmp.le.s32.totalorder 1, %s11
      %p181 = scmp.lt.s32.totalorder %s11, 5
      %p182 = pnand %p180, %p181
      %p183 = pneg %p182
      // Predicated region
      $region29: #{upblock_forward.2} parent=5 // pred_check
        _
      $region30: #{upblock_forward.2} parent=5 // pred_check_branch
        %185 = sbr.rel (%p182) target = $region32
      $region31: #{upblock_forward.2} parent=5 // pred_region
        %s186 = ssub.s32 %s11, 1
        %p187 = scmp.lt.s32.totalorder %s20, 1
        %s188 = scalar_select %p187, %s20, 1
        %s189 = smul.addr %s188, 3
        %s190 = smul.addr %s189, 8
        %s191 = scalar_lea.vmem %s0, %s190
        %p192 = pneg %p49
        %p193 = pneg %p46
        %p194 = pneg %p70
        %p195 = pneg %p67
        %p196 = pneg %p91
        %p197 = pneg %p88
        %p198 = pneg %p119
        %p199 = pneg %p116
        %s200 = sand.u32 %s106, 1
        %s201 = sand.u32 %s106, 1
        %s202 = smul.addr %s201, 32
        %s203 = scalar_lea.vmem [#allocation2], %s202
        %p204 = pneg %p147
        %p205 = pneg %p144
        %p206 = scmp.lt.s32.totalorder %s20, 1
        %s207 = scalar_select %p206, %s20, 1
        %p208 = scmp.lt.s32.totalorder %s21, 1
        %s209 = scalar_select %p208, %s21, 1
        %s210 = smul.addr %s207, 2
        %s211 = sadd.s32 %s209, %s210
        %s212 = smul.addr %s211, 2
        %s213 = scalar_lea.vmem %s4, %s212
        %p214 = scmp.lt.s32.totalorder %s20, 1
        %s215 = scalar_select %p214, %s20, 1
        %s216 = smul.addr %s215, 3
        %s217 = smul.addr %s216, 8
        %s218 = scalar_lea.vmem %s0, %s217
        %p219 = scmp.lt.s32.totalorder %s20, 1
        %s220 = scalar_select %p219, %s20, 1
        %p221 = scmp.lt.s32.totalorder %s21, 1
        %s222 = scalar_select %p221, %s21, 1
        %s223 = smul.addr %s220, 2
        %s224 = sadd.s32 %s222, %s223
        %s225 = smul.addr %s224, 2
        %s226 = scalar_lea.vmem %s4, %s225
        %s227 = smul.u32 %s21, 8
        %s228 = scalar_lea.vmem %s218, %s227
        %v229 = vld [vmem:[%s228] sm:$0xff]
        %v230 = vld [vmem:[%s1] sm:$0xff]
        %v231 = vld [vmem:[%s1 + $0x8] sm:$0xff]
        %v232 = vld [vmem:[%s1 + $0x10] sm:$0xff]
        %v233 = vld [vmem:[%s1 + $0x18] sm:$0xff]
        %v234 = vld [vmem:[%s1 + $0x20] sm:$0xff]
        %v235 = vld [vmem:[%s1 + $0x28] sm:$0xff]
        %v236 = vld [vmem:[%s1 + $0x30] sm:$0xff]
        %v237 = vld [vmem:[%s1 + $0x38] sm:$0xff]
        %v238 = vld [vmem:[%s1 + $0x40] sm:$0xff]
        %v239 = vld [vmem:[%s1 + $0x48] sm:$0xff]
        %v240 = vld [vmem:[%s1 + $0x50] sm:$0xff]
        %v241 = vld [vmem:[%s1 + $0x58] sm:$0xff]
        %v242 = vld [vmem:[%s1 + $0x60] sm:$0xff]
        %v243 = vld [vmem:[%s1 + $0x68] sm:$0xff]
        %v244 = vld [vmem:[%s1 + $0x70] sm:$0xff]
        %v245 = vld [vmem:[%s1 + $0x78] sm:$0xff]
        %v246 = vld [vmem:[%s1 + $0x80] sm:$0xff]
        %v247 = vld [vmem:[%s1 + $0x88] sm:$0xff]
        %s248 = sadd.s32 %s227, 1
        %s249 = scalar_lea.vmem %s218, %s248
        %v250 = vld [vmem:[%s249] sm:$0xff]
        %s251 = scalar_lea.vmem %s1, 144
        %v252 = vld [vmem:[%s251] sm:$0xff]
        %v253 = vld [vmem:[%s251 + $0x8] sm:$0xff]
        %v254 = vld [vmem:[%s251 + $0x10] sm:$0xff]
        %v255 = vld [vmem:[%s251 + $0x18] sm:$0xff]
        %v256 = vld [vmem:[%s251 + $0x20] sm:$0xff]
        %v257 = vld [vmem:[%s251 + $0x28] sm:$0xff]
        %v258 = vld [vmem:[%s251 + $0x30] sm:$0xff]
        %v259 = vld [vmem:[%s251 + $0x38] sm:$0xff]
        %v260 = vld [vmem:[%s251 + $0x40] sm:$0xff]
        %v261 = vld [vmem:[%s251 + $0x48] sm:$0xff]
        %v262 = vld [vmem:[%s251 + $0x50] sm:$0xff]
        %v263 = vld [vmem:[%s251 + $0x58] sm:$0xff]
        %v264 = vld [vmem:[%s251 + $0x60] sm:$0xff]
        %v265 = vld [vmem:[%s251 + $0x68] sm:$0xff]
        %v266 = vld [vmem:[%s251 + $0x70] sm:$0xff]
        %v267 = vld [vmem:[%s251 + $0x78] sm:$0xff]
        %v268 = vld [vmem:[%s251 + $0x80] sm:$0xff]
        %v269 = vld [vmem:[%s251 + $0x88] sm:$0xff]
        %vm270 = vcmask 588800
        %v272 = vsel %vm270, %v250, 0
        %274 = vmatprep.subr.mxu0 0.0
        %275 = vmatpush1.msra.mxu0 0.0
        %276 = vmatprep.subr.mxu0 0.0
        %277 = vmatpush1.msra.mxu0 0.0
        %278 = vmatprep.subr.mxu0 0.0
        %279 = vmatpush1.msra.mxu0 0.0
        %280 = vmatprep.subr.mxu0 0.0
        %281 = vmatpush1.msra.mxu0 0.0
        %282 = vmatprep.subr.mxu0 0.0
        %283 = vmatpush1.msra.mxu0 0.0
        %284 = vmatprep.subr.mxu0 0.0
        %285 = vmatpush1.msra.mxu0 0.0
        %286 = vmatprep.subr.mxu0 0.0
        %287 = vmatpush1.msra.mxu0 0.0
        %288 = vmatprep.subr.mxu0 %v269
        %289 = vmatpush1.msra.mxu0 %v268
        %290 = vmatprep.subr.mxu0 %v267
        %291 = vmatpush1.msra.mxu0 %v266
        %292 = vmatprep.subr.mxu0 %v265
        %293 = vmatpush1.msra.mxu0 %v264
        %294 = vmatprep.subr.mxu0 %v263
        %295 = vmatpush1.msra.mxu0 %v262
        %296 = vmatprep.subr.mxu0 %v261
        %297 = vmatpush1.msra.mxu0 %v260
        %298 = vmatprep.subr.mxu0 %v259
        %299 = vmatpush1.msra.mxu0 %v258
        %300 = vmatprep.subr.mxu0 %v257
        %301 = vmatpush1.msra.mxu0 %v256
        %302 = vmatprep.subr.mxu0 %v255
        %303 = vmatpush1.msra.mxu0 %v254
        %304 = vmatprep.subr.mxu0 %v253
        %305 = vmatpush1.msra.mxu0 %v252
        %306 = vmatprep.subr.mxu0 0.0
        %307 = vmatpush2.msra.mxu0 0.0
        %308 = vmatprep.subr.mxu0 0.0
        %309 = vmatpush2.msra.mxu0 0.0
        %310 = vmatprep.subr.mxu0 0.0
        %311 = vmatpush2.msra.mxu0 0.0
        %312 = vmatprep.subr.mxu0 0.0
        %313 = vmatpush2.msra.mxu0 0.0
        %314 = vmatprep.subr.mxu0 0.0
        %315 = vmatpush2.msra.mxu0 0.0
        %316 = vmatprep.subr.mxu0 0.0
        %317 = vmatpush2.msra.mxu0 0.0
        %318 = vmatprep.subr.mxu0 0.0
        %319 = vmatpush2.msra.mxu0 0.0
        %320 = vmatprep.subr.mxu0 0.0
        %321 = vmatpush2.msra.mxu0 0.0
        %322 = vmatprep.subr.mxu0 0.0
        %323 = vmatpush2.msra.mxu0 0.0
        %324 = vmatprep.subr.mxu0 0.0
        %325 = vmatpush2.msra.mxu0 0.0
        %326 = vmatprep.subr.mxu0 0.0
        %327 = vmatpush2.msra.mxu0 0.0
        %328 = vmatprep.subr.mxu0 0.0
        %329 = vmatpush2.msra.mxu0 0.0
        %330 = vmatprep.subr.mxu0 0.0
        %331 = vmatpush2.msra.mxu0 0.0
        %332 = vmatprep.subr.mxu0 0.0
        %333 = vmatpush2.msra.mxu0 0.0
        %334 = vmatprep.subr.mxu0 0.0
        %335 = vmatpush2.msra.mxu0 0.0
        %336 = vmatprep.subr.mxu0 0.0
        %337 = vmatpush2.msra.mxu0 0.0
        %338 = vmatprep.mubr.f32.mxu0 0.0
        %339 = vmatmul.mubr.f32.gmra.mxu0 %v272
        %v340 = vpop.f32.mrf.mxu0
        %v341 = vadd.f32 0.0, %v340
        %v342 = vpop.f32.mrf.mxu0
        %v343 = vadd.f32 0.0, %v342
        %344 = vdwg.mxu0
        %v346 = vsel %vm270, %v229, 0
        %348 = vmatprep.subr.mxu0 0.0
        %349 = vmatpush1.msra.mxu0 0.0
        %350 = vmatprep.subr.mxu0 0.0
        %351 = vmatpush1.msra.mxu0 0.0
        %352 = vmatprep.subr.mxu0 0.0
        %353 = vmatpush1.msra.mxu0 0.0
        %354 = vmatprep.subr.mxu0 0.0
        %355 = vmatpush1.msra.mxu0 0.0
        %356 = vmatprep.subr.mxu0 0.0
        %357 = vmatpush1.msra.mxu0 0.0
        %358 = vmatprep.subr.mxu0 0.0
        %359 = vmatpush1.msra.mxu0 0.0
        %360 = vmatprep.subr.mxu0 0.0
        %361 = vmatpush1.msra.mxu0 0.0
        %362 = vmatprep.subr.mxu0 %v247
        %363 = vmatpush1.msra.mxu0 %v246
        %364 = vmatprep.subr.mxu0 %v245
        %365 = vmatpush1.msra.mxu0 %v244
        %366 = vmatprep.subr.mxu0 %v243
        %367 = vmatpush1.msra.mxu0 %v242
        %368 = vmatprep.subr.mxu0 %v241
        %369 = vmatpush1.msra.mxu0 %v240
        %370 = vmatprep.subr.mxu0 %v239
        %371 = vmatpush1.msra.mxu0 %v238
        %372 = vmatprep.subr.mxu0 %v237
        %373 = vmatpush1.msra.mxu0 %v236
        %374 = vmatprep.subr.mxu0 %v235
        %375 = vmatpush1.msra.mxu0 %v234
        %376 = vmatprep.subr.mxu0 %v233
        %377 = vmatpush1.msra.mxu0 %v232
        %378 = vmatprep.subr.mxu0 %v231
        %379 = vmatpush1.msra.mxu0 %v230
        %380 = vmatprep.subr.mxu0 0.0
        %381 = vmatpush2.msra.mxu0 0.0
        %382 = vmatprep.subr.mxu0 0.0
        %383 = vmatpush2.msra.mxu0 0.0
        %384 = vmatprep.subr.mxu0 0.0
        %385 = vmatpush2.msra.mxu0 0.0
        %386 = vmatprep.subr.mxu0 0.0
        %387 = vmatpush2.msra.mxu0 0.0
        %388 = vmatprep.subr.mxu0 0.0
        %389 = vmatpush2.msra.mxu0 0.0
        %390 = vmatprep.subr.mxu0 0.0
        %391 = vmatpush2.msra.mxu0 0.0
        %392 = vmatprep.subr.mxu0 0.0
        %393 = vmatpush2.msra.mxu0 0.0
        %394 = vmatprep.subr.mxu0 0.0
        %395 = vmatpush2.msra.mxu0 0.0
        %396 = vmatprep.subr.mxu0 0.0
        %397 = vmatpush2.msra.mxu0 0.0
        %398 = vmatprep.subr.mxu0 0.0
        %399 = vmatpush2.msra.mxu0 0.0
        %400 = vmatprep.subr.mxu0 0.0
        %401 = vmatpush2.msra.mxu0 0.0
        %402 = vmatprep.subr.mxu0 0.0
        %403 = vmatpush2.msra.mxu0 0.0
        %404 = vmatprep.subr.mxu0 0.0
        %405 = vmatpush2.msra.mxu0 0.0
        %406 = vmatprep.subr.mxu0 0.0
        %407 = vmatpush2.msra.mxu0 0.0
        %408 = vmatprep.subr.mxu0 0.0
        %409 = vmatpush2.msra.mxu0 0.0
        %410 = vmatprep.subr.mxu0 0.0
        %411 = vmatpush2.msra.mxu0 0.0
        %412 = vmatprep.mubr.f32.mxu0 0.0
        %413 = vmatmul.mubr.f32.gmra.mxu0 %v346
        %v414 = vpop.f32.mrf.mxu0
        %v415 = vadd.f32 %v341, %v414
        %v416 = vpop.f32.mrf.mxu0
        %v417 = vadd.f32 %v343, %v416
        %418 = vdwg.mxu0
        %419 = vst [vmem:[%s203] sm:$0xff] %v415
        %420 = vst [vmem:[%s203 + $0x8] sm:$0xff] %v417
        %vm421 = vcmask 64512
        %v423 = vsel %vm421, 1.0, 0
        %425 = vmatprep.subr.mxu0 0.0
        %426 = vmatpush1.msra.mxu0 0.0
        %427 = vmatprep.subr.mxu0 0.0
        %428 = vmatpush1.msra.mxu0 0.0
        %429 = vmatprep.subr.mxu0 0.0
        %430 = vmatpush1.msra.mxu0 0.0
        %431 = vmatprep.subr.mxu0 0.0
        %432 = vmatpush1.msra.mxu0 0.0
        %433 = vmatprep.subr.mxu0 0.0
        %434 = vmatpush1.msra.mxu0 0.0
        %435 = vmatprep.subr.mxu0 0.0
        %436 = vmatpush1.msra.mxu0 0.0
        %437 = vmatprep.subr.mxu0 0.0
        %438 = vmatpush1.msra.mxu0 0.0
        %439 = vmatprep.subr.mxu0 0.0
        %440 = vmatpush1.msra.mxu0 0.0
        %441 = vmatprep.subr.mxu0 0.0
        %442 = vmatpush1.msra.mxu0 0.0
        %443 = vmatprep.subr.mxu0 0.0
        %444 = vmatpush1.msra.mxu0 0.0
        %445 = vmatprep.subr.mxu0 0.0
        %446 = vmatpush1.msra.mxu0 0.0
        %447 = vmatprep.subr.mxu0 0.0
        %448 = vmatpush1.msra.mxu0 0.0
        %449 = vmatprep.subr.mxu0 0.0
        %450 = vmatpush1.msra.mxu0 0.0
        %451 = vmatprep.subr.mxu0 0.0
        %452 = vmatpush1.msra.mxu0 0.0
        %453 = vmatprep.subr.mxu0 0.0
        %454 = vmatpush1.msra.mxu0 0.0
        %455 = vmatprep.subr.mxu0 %v417
        %456 = vmatpush1.msra.mxu0 %v415
        %457 = vmatprep.subr.mxu0 0.0
        %458 = vmatpush2.msra.mxu0 0.0
        %459 = vmatprep.subr.mxu0 0.0
        %460 = vmatpush2.msra.mxu0 0.0
        %461 = vmatprep.subr.mxu0 0.0
        %462 = vmatpush2.msra.mxu0 0.0
        %463 = vmatprep.subr.mxu0 0.0
        %464 = vmatpush2.msra.mxu0 0.0
        %465 = vmatprep.subr.mxu0 0.0
        %466 = vmatpush2.msra.mxu0 0.0
        %467 = vmatprep.subr.mxu0 0.0
        %468 = vmatpush2.msra.mxu0 0.0
        %469 = vmatprep.subr.mxu0 0.0
        %470 = vmatpush2.msra.mxu0 0.0
        %471 = vmatprep.subr.mxu0 0.0
        %472 = vmatpush2.msra.mxu0 0.0
        %473 = vmatprep.subr.mxu0 0.0
        %474 = vmatpush2.msra.mxu0 0.0
        %475 = vmatprep.subr.mxu0 0.0
        %476 = vmatpush2.msra.mxu0 0.0
        %477 = vmatprep.subr.mxu0 0.0
        %478 = vmatpush2.msra.mxu0 0.0
        %479 = vmatprep.subr.mxu0 0.0
        %480 = vmatpush2.msra.mxu0 0.0
        %481 = vmatprep.subr.mxu0 0.0
        %482 = vmatpush2.msra.mxu0 0.0
        %483 = vmatprep.subr.mxu0 0.0
        %484 = vmatpush2.msra.mxu0 0.0
        %485 = vmatprep.subr.mxu0 0.0
        %486 = vmatpush2.msra.mxu0 0.0
        %487 = vmatprep.subr.mxu0 0.0
        %488 = vmatpush2.msra.mxu0 0.0
        %489 = vmatprep.mubr.f32.mxu0 0.0
        %490 = vmatmul.mubr.f32.gmra.mxu0 %v423
        %v491 = vpop.f32.mrf.mxu0
        %v492 = vadd.f32 0.0, %v491
        %v493 = vpop.f32.mrf.mxu0
        %v494 = vadd.f32 0.0, %v493
        %495 = vdwg.mxu0
        %v496 = vmul.f32 %v415, %v415
        %v497 = vmul.f32 %v417, %v417
        %498 = vmatprep.subr.mxu0 0.0
        %499 = vmatpush1.msra.mxu0 0.0
        %500 = vmatprep.subr.mxu0 0.0
        %501 = vmatpush1.msra.mxu0 0.0
        %502 = vmatprep.subr.mxu0 0.0
        %503 = vmatpush1.msra.mxu0 0.0
        %504 = vmatprep.subr.mxu0 0.0
        %505 = vmatpush1.msra.mxu0 0.0
        %506 = vmatprep.subr.mxu0 0.0
        %507 = vmatpush1.msra.mxu0 0.0
        %508 = vmatprep.subr.mxu0 0.0
        %509 = vmatpush1.msra.mxu0 0.0
        %510 = vmatprep.subr.mxu0 0.0
        %511 = vmatpush1.msra.mxu0 0.0
        %512 = vmatprep.subr.mxu0 0.0
        %513 = vmatpush1.msra.mxu0 0.0
        %514 = vmatprep.subr.mxu0 0.0
        %515 = vmatpush1.msra.mxu0 0.0
        %516 = vmatprep.subr.mxu0 0.0
        %517 = vmatpush1.msra.mxu0 0.0
        %518 = vmatprep.subr.mxu0 0.0
        %519 = vmatpush1.msra.mxu0 0.0
        %520 = vmatprep.subr.mxu0 0.0
        %521 = vmatpush1.msra.mxu0 0.0
        %522 = vmatprep.subr.mxu0 0.0
        %523 = vmatpush1.msra.mxu0 0.0
        %524 = vmatprep.subr.mxu0 0.0
        %525 = vmatpush1.msra.mxu0 0.0
        %526 = vmatprep.subr.mxu0 0.0
        %527 = vmatpush1.msra.mxu0 0.0
        %528 = vmatprep.subr.mxu0 %v497
        %529 = vmatpush1.msra.mxu0 %v496
        %530 = vmatprep.subr.mxu0 0.0
        %531 = vmatpush2.msra.mxu0 0.0
        %532 = vmatprep.subr.mxu0 0.0
        %533 = vmatpush2.msra.mxu0 0.0
        %534 = vmatprep.subr.mxu0 0.0
        %535 = vmatpush2.msra.mxu0 0.0
        %536 = vmatprep.subr.mxu0 0.0
        %537 = vmatpush2.msra.mxu0 0.0
        %538 = vmatprep.subr.mxu0 0.0
        %539 = vmatpush2.msra.mxu0 0.0
        %540 = vmatprep.subr.mxu0 0.0
        %541 = vmatpush2.msra.mxu0 0.0
        %542 = vmatprep.subr.mxu0 0.0
        %543 = vmatpush2.msra.mxu0 0.0
        %544 = vmatprep.subr.mxu0 0.0
        %545 = vmatpush2.msra.mxu0 0.0
        %546 = vmatprep.subr.mxu0 0.0
        %547 = vmatpush2.msra.mxu0 0.0
        %548 = vmatprep.subr.mxu0 0.0
        %549 = vmatpush2.msra.mxu0 0.0
        %550 = vmatprep.subr.mxu0 0.0
        %551 = vmatpush2.msra.mxu0 0.0
        %552 = vmatprep.subr.mxu0 0.0
        %553 = vmatpush2.msra.mxu0 0.0
        %554 = vmatprep.subr.mxu0 0.0
        %555 = vmatpush2.msra.mxu0 0.0
        %556 = vmatprep.subr.mxu0 0.0
        %557 = vmatpush2.msra.mxu0 0.0
        %558 = vmatprep.subr.mxu0 0.0
        %559 = vmatpush2.msra.mxu0 0.0
        %560 = vmatprep.subr.mxu0 0.0
        %561 = vmatpush2.msra.mxu0 0.0
        %562 = vmatprep.mubr.f32.mxu0 0.0
        %563 = vmatmul.mubr.f32.gmra.mxu0 %v423
        %v564 = vpop.f32.mrf.mxu0
        %v565 = vadd.f32 0.0, %v564
        %v566 = vpop.f32.mrf.mxu0
        %v567 = vadd.f32 0.0, %v566
        %568 = vdwg.mxu0
        %v569 = vld [vmem:[%s2] sm:$0xff]
        %v570 = vld [vmem:[%s2 + $0x8] sm:$0xff]
        %v571 = vld [vmem:[%s2 + $0x10] sm:$0xff]
        %v572 = vld [vmem:[%s2 + $0x18] sm:$0xff]
        %v573 = vld [vmem:[%s2 + $0x20] sm:$0xff]
        %v574 = vld [vmem:[%s2 + $0x28] sm:$0xff]
        %v575 = vld [vmem:[%s2 + $0x30] sm:$0xff]
        %v576 = vld [vmem:[%s2 + $0x38] sm:$0xff]
        %v577 = vld [vmem:[%s2 + $0x40] sm:$0xff]
        %v578 = vld [vmem:[%s2 + $0x48] sm:$0xff]
        %v579 = vld [vmem:[%s2 + $0x50] sm:$0xff]
        %v580 = vld [vmem:[%s2 + $0x58] sm:$0xff]
        %v581 = vld [vmem:[%s2 + $0x60] sm:$0xff]
        %v582 = vld [vmem:[%s2 + $0x68] sm:$0xff]
        %v583 = vld [vmem:[%s2 + $0x70] sm:$0xff]
        %v584 = vld [vmem:[%s2 + $0x78] sm:$0xff]
        %v585 = vld [vmem:[%s2 + $0x80] sm:$0xff]
        %v586 = vld [vmem:[%s2 + $0x88] sm:$0xff]
        %v587 = vld [vmem:[%s2 + $0x90] sm:$0xff]
        %v588 = vld [vmem:[%s2 + $0x98] sm:$0xff]
        %v589 = vld [vmem:[%s2 + $0xa0] sm:$0xff]
        %v590 = vld [vmem:[%s2 + $0xa8] sm:$0xff]
        %v591 = vld [vmem:[%s2 + $0xb0] sm:$0xff]
        %v592 = vld [vmem:[%s2 + $0xb8] sm:$0xff]
        %v593 = vld [vmem:[%s2 + $0xc0] sm:$0xff]
        %v594 = vld [vmem:[%s2 + $0xc8] sm:$0xff]
        %v595 = vld [vmem:[%s2 + $0xd0] sm:$0xff]
        %v596 = vld [vmem:[%s2 + $0xd8] sm:$0xff]
        %v597 = vld [vmem:[%s2 + $0xe0] sm:$0xff]
        %v598 = vld [vmem:[%s2 + $0xe8] sm:$0xff]
        %v599 = vld [vmem:[%s2 + $0xf0] sm:$0xff]
        %v600 = vld [vmem:[%s2 + $0xf8] sm:$0xff]
        %v601 = vld [vmem:[%s249] sm:$0xff]
        %s602 = scalar_lea.vmem %s1, 288
        %v603 = vld [vmem:[%s602] sm:$0xff]
        %v604 = vld [vmem:[%s602 + $0x8] sm:$0xff]
        %v605 = vld [vmem:[%s602 + $0x10] sm:$0xff]
        %v606 = vld [vmem:[%s602 + $0x18] sm:$0xff]
        %v607 = vld [vmem:[%s602 + $0x20] sm:$0xff]
        %v608 = vld [vmem:[%s602 + $0x28] sm:$0xff]
        %v609 = vld [vmem:[%s602 + $0x30] sm:$0xff]
        %v610 = vld [vmem:[%s602 + $0x38] sm:$0xff]
        %v611 = vld [vmem:[%s602 + $0x40] sm:$0xff]
        %v612 = vld [vmem:[%s602 + $0x48] sm:$0xff]
        %v613 = vld [vmem:[%s602 + $0x50] sm:$0xff]
        %v614 = vld [vmem:[%s602 + $0x58] sm:$0xff]
        %v615 = vld [vmem:[%s602 + $0x60] sm:$0xff]
        %v616 = vld [vmem:[%s602 + $0x68] sm:$0xff]
        %v617 = vld [vmem:[%s602 + $0x70] sm:$0xff]
        %v618 = vld [vmem:[%s602 + $0x78] sm:$0xff]
        %v619 = vld [vmem:[%s602 + $0x80] sm:$0xff]
        %v620 = vld [vmem:[%s602 + $0x88] sm:$0xff]
        %s621 = sadd.s32 %s227, 2
        %s622 = scalar_lea.vmem %s218, %s621
        %v623 = vld [vmem:[%s622] sm:$0xff]
        %s624 = scalar_lea.vmem %s1, 432
        %v625 = vld [vmem:[%s624] sm:$0xff]
        %v626 = vld [vmem:[%s624 + $0x8] sm:$0xff]
        %v627 = vld [vmem:[%s624 + $0x10] sm:$0xff]
        %v628 = vld [vmem:[%s624 + $0x18] sm:$0xff]
        %v629 = vld [vmem:[%s624 + $0x20] sm:$0xff]
        %v630 = vld [vmem:[%s624 + $0x28] sm:$0xff]
        %v631 = vld [vmem:[%s624 + $0x30] sm:$0xff]
        %v632 = vld [vmem:[%s624 + $0x38] sm:$0xff]
        %v633 = vld [vmem:[%s624 + $0x40] sm:$0xff]
        %v634 = vld [vmem:[%s624 + $0x48] sm:$0xff]
        %v635 = vld [vmem:[%s624 + $0x50] sm:$0xff]
        %v636 = vld [vmem:[%s624 + $0x58] sm:$0xff]
        %v637 = vld [vmem:[%s624 + $0x60] sm:$0xff]
        %v638 = vld [vmem:[%s624 + $0x68] sm:$0xff]
        %v639 = vld [vmem:[%s624 + $0x70] sm:$0xff]
        %v640 = vld [vmem:[%s624 + $0x78] sm:$0xff]
        %v641 = vld [vmem:[%s624 + $0x80] sm:$0xff]
        %v642 = vld [vmem:[%s624 + $0x88] sm:$0xff]
        %v644 = vsel %vm270, %v623, 0
        %646 = vmatprep.subr.mxu0 0.0
        %647 = vmatpush1.msra.mxu0 0.0
        %648 = vmatprep.subr.mxu0 0.0
        %649 = vmatpush1.msra.mxu0 0.0
        %650 = vmatprep.subr.mxu0 0.0
        %651 = vmatpush1.msra.mxu0 0.0
        %652 = vmatprep.subr.mxu0 0.0
        %653 = vmatpush1.msra.mxu0 0.0
        %654 = vmatprep.subr.mxu0 0.0
        %655 = vmatpush1.msra.mxu0 0.0
        %656 = vmatprep.subr.mxu0 0.0
        %657 = vmatpush1.msra.mxu0 0.0
        %658 = vmatprep.subr.mxu0 0.0
        %659 = vmatpush1.msra.mxu0 0.0
        %660 = vmatprep.subr.mxu0 %v642
        %661 = vmatpush1.msra.mxu0 %v641
        %662 = vmatprep.subr.mxu0 %v640
        %663 = vmatpush1.msra.mxu0 %v639
        %664 = vmatprep.subr.mxu0 %v638
        %665 = vmatpush1.msra.mxu0 %v637
        %666 = vmatprep.subr.mxu0 %v636
        %667 = vmatpush1.msra.mxu0 %v635
        %668 = vmatprep.subr.mxu0 %v634
        %669 = vmatpush1.msra.mxu0 %v633
        %670 = vmatprep.subr.mxu0 %v632
        %671 = vmatpush1.msra.mxu0 %v631
        %672 = vmatprep.subr.mxu0 %v630
        %673 = vmatpush1.msra.mxu0 %v629
        %674 = vmatprep.subr.mxu0 %v628
        %675 = vmatpush1.msra.mxu0 %v627
        %676 = vmatprep.subr.mxu0 %v626
        %677 = vmatpush1.msra.mxu0 %v625
        %678 = vmatprep.subr.mxu0 0.0
        %679 = vmatpush2.msra.mxu0 0.0
        %680 = vmatprep.subr.mxu0 0.0
        %681 = vmatpush2.msra.mxu0 0.0
        %682 = vmatprep.subr.mxu0 0.0
        %683 = vmatpush2.msra.mxu0 0.0
        %684 = vmatprep.subr.mxu0 0.0
        %685 = vmatpush2.msra.mxu0 0.0
        %686 = vmatprep.subr.mxu0 0.0
        %687 = vmatpush2.msra.mxu0 0.0
        %688 = vmatprep.subr.mxu0 0.0
        %689 = vmatpush2.msra.mxu0 0.0
        %690 = vmatprep.subr.mxu0 0.0
        %691 = vmatpush2.msra.mxu0 0.0
        %692 = vmatprep.subr.mxu0 0.0
        %693 = vmatpush2.msra.mxu0 0.0
        %694 = vmatprep.subr.mxu0 0.0
        %695 = vmatpush2.msra.mxu0 0.0
        %696 = vmatprep.subr.mxu0 0.0
        %697 = vmatpush2.msra.mxu0 0.0
        %698 = vmatprep.subr.mxu0 0.0
        %699 = vmatpush2.msra.mxu0 0.0
        %700 = vmatprep.subr.mxu0 0.0
        %701 = vmatpush2.msra.mxu0 0.0
        %702 = vmatprep.subr.mxu0 0.0
        %703 = vmatpush2.msra.mxu0 0.0
        %704 = vmatprep.subr.mxu0 0.0
        %705 = vmatpush2.msra.mxu0 0.0
        %706 = vmatprep.subr.mxu0 0.0
        %707 = vmatpush2.msra.mxu0 0.0
        %708 = vmatprep.subr.mxu0 0.0
        %709 = vmatpush2.msra.mxu0 0.0
        %710 = vmatprep.mubr.f32.mxu0 0.0
        %711 = vmatmul.mubr.f32.gmra.mxu0 %v644
        %v712 = vpop.f32.mrf.mxu0
        %v713 = vadd.f32 0.0, %v712
        %v714 = vpop.f32.mrf.mxu0
        %v715 = vadd.f32 0.0, %v714
        %716 = vdwg.mxu0
        %v718 = vsel %vm270, %v601, 0
        %720 = vmatprep.subr.mxu0 0.0
        %721 = vmatpush1.msra.mxu0 0.0
        %722 = vmatprep.subr.mxu0 0.0
        %723 = vmatpush1.msra.mxu0 0.0
        %724 = vmatprep.subr.mxu0 0.0
        %725 = vmatpush1.msra.mxu0 0.0
        %726 = vmatprep.subr.mxu0 0.0
        %727 = vmatpush1.msra.mxu0 0.0
        %728 = vmatprep.subr.mxu0 0.0
        %729 = vmatpush1.msra.mxu0 0.0
        %730 = vmatprep.subr.mxu0 0.0
        %731 = vmatpush1.msra.mxu0 0.0
        %732 = vmatprep.subr.mxu0 0.0
        %733 = vmatpush1.msra.mxu0 0.0
        %734 = vmatprep.subr.mxu0 %v620
        %735 = vmatpush1.msra.mxu0 %v619
        %736 = vmatprep.subr.mxu0 %v618
        %737 = vmatpush1.msra.mxu0 %v617
        %738 = vmatprep.subr.mxu0 %v616
        %739 = vmatpush1.msra.mxu0 %v615
        %740 = vmatprep.subr.mxu0 %v614
        %741 = vmatpush1.msra.mxu0 %v613
        %742 = vmatprep.subr.mxu0 %v612
        %743 = vmatpush1.msra.mxu0 %v611
        %744 = vmatprep.subr.mxu0 %v610
        %745 = vmatpush1.msra.mxu0 %v609
        %746 = vmatprep.subr.mxu0 %v608
        %747 = vmatpush1.msra.mxu0 %v607
        %748 = vmatprep.subr.mxu0 %v606
        %749 = vmatpush1.msra.mxu0 %v605
        %750 = vmatprep.subr.mxu0 %v604
        %751 = vmatpush1.msra.mxu0 %v603
        %752 = vmatprep.subr.mxu0 0.0
        %753 = vmatpush2.msra.mxu0 0.0
        %754 = vmatprep.subr.mxu0 0.0
        %755 = vmatpush2.msra.mxu0 0.0
        %756 = vmatprep.subr.mxu0 0.0
        %757 = vmatpush2.msra.mxu0 0.0
        %758 = vmatprep.subr.mxu0 0.0
        %759 = vmatpush2.msra.mxu0 0.0
        %760 = vmatprep.subr.mxu0 0.0
        %761 = vmatpush2.msra.mxu0 0.0
        %762 = vmatprep.subr.mxu0 0.0
        %763 = vmatpush2.msra.mxu0 0.0
        %764 = vmatprep.subr.mxu0 0.0
        %765 = vmatpush2.msra.mxu0 0.0
        %766 = vmatprep.subr.mxu0 0.0
        %767 = vmatpush2.msra.mxu0 0.0
        %768 = vmatprep.subr.mxu0 0.0
        %769 = vmatpush2.msra.mxu0 0.0
        %770 = vmatprep.subr.mxu0 0.0
        %771 = vmatpush2.msra.mxu0 0.0
        %772 = vmatprep.subr.mxu0 0.0
        %773 = vmatpush2.msra.mxu0 0.0
        %774 = vmatprep.subr.mxu0 0.0
        %775 = vmatpush2.msra.mxu0 0.0
        %776 = vmatprep.subr.mxu0 0.0
        %777 = vmatpush2.msra.mxu0 0.0
        %778 = vmatprep.subr.mxu0 0.0
        %779 = vmatpush2.msra.mxu0 0.0
        %780 = vmatprep.subr.mxu0 0.0
        %781 = vmatpush2.msra.mxu0 0.0
        %782 = vmatprep.subr.mxu0 0.0
        %783 = vmatpush2.msra.mxu0 0.0
        %784 = vmatprep.mubr.f32.mxu0 0.0
        %785 = vmatmul.mubr.f32.gmra.mxu0 %v718
        %v786 = vpop.f32.mrf.mxu0
        %v787 = vadd.f32 %v713, %v786
        %v788 = vpop.f32.mrf.mxu0
        %v789 = vadd.f32 %v715, %v788
        %790 = vdwg.mxu0
        %s791 = scalar_lea.vmem %s203, 16 [#allocation2]
        %792 = vst [vmem:[%s791] sm:$0xff] %v787
        %793 = vst [vmem:[%s791 + $0x8] sm:$0xff] %v789
        %794 = vmatprep.subr.mxu0 0.0
        %795 = vmatpush1.msra.mxu0 0.0
        %796 = vmatprep.subr.mxu0 0.0
        %797 = vmatpush1.msra.mxu0 0.0
        %798 = vmatprep.subr.mxu0 0.0
        %799 = vmatpush1.msra.mxu0 0.0
        %800 = vmatprep.subr.mxu0 0.0
        %801 = vmatpush1.msra.mxu0 0.0
        %802 = vmatprep.subr.mxu0 0.0
        %803 = vmatpush1.msra.mxu0 0.0
        %804 = vmatprep.subr.mxu0 0.0
        %805 = vmatpush1.msra.mxu0 0.0
        %806 = vmatprep.subr.mxu0 0.0
        %807 = vmatpush1.msra.mxu0 0.0
        %808 = vmatprep.subr.mxu0 0.0
        %809 = vmatpush1.msra.mxu0 0.0
        %810 = vmatprep.subr.mxu0 0.0
        %811 = vmatpush1.msra.mxu0 0.0
        %812 = vmatprep.subr.mxu0 0.0
        %813 = vmatpush1.msra.mxu0 0.0
        %814 = vmatprep.subr.mxu0 0.0
        %815 = vmatpush1.msra.mxu0 0.0
        %816 = vmatprep.subr.mxu0 0.0
        %817 = vmatpush1.msra.mxu0 0.0
        %818 = vmatprep.subr.mxu0 0.0
        %819 = vmatpush1.msra.mxu0 0.0
        %820 = vmatprep.subr.mxu0 0.0
        %821 = vmatpush1.msra.mxu0 0.0
        %822 = vmatprep.subr.mxu0 0.0
        %823 = vmatpush1.msra.mxu0 0.0
        %824 = vmatprep.subr.mxu0 %v789
        %825 = vmatpush1.msra.mxu0 %v787
        %826 = vmatprep.subr.mxu0 0.0
        %827 = vmatpush2.msra.mxu0 0.0
        %828 = vmatprep.subr.mxu0 0.0
        %829 = vmatpush2.msra.mxu0 0.0
        %830 = vmatprep.subr.mxu0 0.0
        %831 = vmatpush2.msra.mxu0 0.0
        %832 = vmatprep.subr.mxu0 0.0
        %833 = vmatpush2.msra.mxu0 0.0
        %834 = vmatprep.subr.mxu0 0.0
        %835 = vmatpush2.msra.mxu0 0.0
        %836 = vmatprep.subr.mxu0 0.0
        %837 = vmatpush2.msra.mxu0 0.0
        %838 = vmatprep.subr.mxu0 0.0
        %839 = vmatpush2.msra.mxu0 0.0
        %840 = vmatprep.subr.mxu0 0.0
        %841 = vmatpush2.msra.mxu0 0.0
        %842 = vmatprep.subr.mxu0 0.0
        %843 = vmatpush2.msra.mxu0 0.0
        %844 = vmatprep.subr.mxu0 0.0
        %845 = vmatpush2.msra.mxu0 0.0
        %846 = vmatprep.subr.mxu0 0.0
        %847 = vmatpush2.msra.mxu0 0.0
        %848 = vmatprep.subr.mxu0 0.0
        %849 = vmatpush2.msra.mxu0 0.0
        %850 = vmatprep.subr.mxu0 0.0
        %851 = vmatpush2.msra.mxu0 0.0
        %852 = vmatprep.subr.mxu0 0.0
        %853 = vmatpush2.msra.mxu0 0.0
        %854 = vmatprep.subr.mxu0 0.0
        %855 = vmatpush2.msra.mxu0 0.0
        %856 = vmatprep.subr.mxu0 0.0
        %857 = vmatpush2.msra.mxu0 0.0
        %858 = vmatprep.mubr.f32.mxu0 0.0
        %859 = vmatmul.mubr.f32.gmra.mxu0 %v423
        %v860 = vpop.f32.mrf.mxu0
        %v861 = vadd.f32 0.0, %v860
        %v862 = vpop.f32.mrf.mxu0
        %v863 = vadd.f32 0.0, %v862
        %864 = vdwg.mxu0
        %v865 = vmul.f32 %v787, %v787
        %v866 = vmul.f32 %v789, %v789
        %867 = vmatprep.subr.mxu0 0.0
        %868 = vmatpush1.msra.mxu0 0.0
        %869 = vmatprep.subr.mxu0 0.0
        %870 = vmatpush1.msra.mxu0 0.0
        %871 = vmatprep.subr.mxu0 0.0
        %872 = vmatpush1.msra.mxu0 0.0
        %873 = vmatprep.subr.mxu0 0.0
        %874 = vmatpush1.msra.mxu0 0.0
        %875 = vmatprep.subr.mxu0 0.0
        %876 = vmatpush1.msra.mxu0 0.0
        %877 = vmatprep.subr.mxu0 0.0
        %878 = vmatpush1.msra.mxu0 0.0
        %879 = vmatprep.subr.mxu0 0.0
        %880 = vmatpush1.msra.mxu0 0.0
        %881 = vmatprep.subr.mxu0 0.0
        %882 = vmatpush1.msra.mxu0 0.0
        %883 = vmatprep.subr.mxu0 0.0
        %884 = vmatpush1.msra.mxu0 0.0
        %885 = vmatprep.subr.mxu0 0.0
        %886 = vmatpush1.msra.mxu0 0.0
        %887 = vmatprep.subr.mxu0 0.0
        %888 = vmatpush1.msra.mxu0 0.0
        %889 = vmatprep.subr.mxu0 0.0
        %890 = vmatpush1.msra.mxu0 0.0
        %891 = vmatprep.subr.mxu0 0.0
        %892 = vmatpush1.msra.mxu0 0.0
        %893 = vmatprep.subr.mxu0 0.0
        %894 = vmatpush1.msra.mxu0 0.0
        %895 = vmatprep.subr.mxu0 0.0
        %896 = vmatpush1.msra.mxu0 0.0
        %897 = vmatprep.subr.mxu0 %v866
        %898 = vmatpush1.msra.mxu0 %v865
        %899 = vmatprep.subr.mxu0 0.0
        %900 = vmatpush2.msra.mxu0 0.0
        %901 = vmatprep.subr.mxu0 0.0
        %902 = vmatpush2.msra.mxu0 0.0
        %903 = vmatprep.subr.mxu0 0.0
        %904 = vmatpush2.msra.mxu0 0.0
        %905 = vmatprep.subr.mxu0 0.0
        %906 = vmatpush2.msra.mxu0 0.0
        %907 = vmatprep.subr.mxu0 0.0
        %908 = vmatpush2.msra.mxu0 0.0
        %909 = vmatprep.subr.mxu0 0.0
        %910 = vmatpush2.msra.mxu0 0.0
        %911 = vmatprep.subr.mxu0 0.0
        %912 = vmatpush2.msra.mxu0 0.0
        %913 = vmatprep.subr.mxu0 0.0
        %914 = vmatpush2.msra.mxu0 0.0
        %915 = vmatprep.subr.mxu0 0.0
        %916 = vmatpush2.msra.mxu0 0.0
        %917 = vmatprep.subr.mxu0 0.0
        %918 = vmatpush2.msra.mxu0 0.0
        %919 = vmatprep.subr.mxu0 0.0
        %920 = vmatpush2.msra.mxu0 0.0
        %921 = vmatprep.subr.mxu0 0.0
        %922 = vmatpush2.msra.mxu0 0.0
        %923 = vmatprep.subr.mxu0 0.0
        %924 = vmatpush2.msra.mxu0 0.0
        %925 = vmatprep.subr.mxu0 0.0
        %926 = vmatpush2.msra.mxu0 0.0
        %927 = vmatprep.subr.mxu0 0.0
        %928 = vmatpush2.msra.mxu0 0.0
        %929 = vmatprep.subr.mxu0 0.0
        %930 = vmatpush2.msra.mxu0 0.0
        %931 = vmatprep.mubr.f32.mxu0 0.0
        %932 = vmatmul.mubr.f32.gmra.mxu0 %v423
        %v933 = vpop.f32.mrf.mxu0
        %v934 = vadd.f32 0.0, %v933
        %v935 = vpop.f32.mrf.mxu0
        %v936 = vadd.f32 0.0, %v935
        %937 = vdwg.mxu0
        %v938 = vld [vmem:[%s2] sm:$0xff]
        %v939 = vld [vmem:[%s2 + $0x8] sm:$0xff]
        %v940 = vld [vmem:[%s2 + $0x10] sm:$0xff]
        %v941 = vld [vmem:[%s2 + $0x18] sm:$0xff]
        %v942 = vld [vmem:[%s2 + $0x20] sm:$0xff]
        %v943 = vld [vmem:[%s2 + $0x28] sm:$0xff]
        %v944 = vld [vmem:[%s2 + $0x30] sm:$0xff]
        %v945 = vld [vmem:[%s2 + $0x38] sm:$0xff]
        %v946 = vld [vmem:[%s2 + $0x40] sm:$0xff]
        %v947 = vld [vmem:[%s2 + $0x48] sm:$0xff]
        %v948 = vld [vmem:[%s2 + $0x50] sm:$0xff]
        %v949 = vld [vmem:[%s2 + $0x58] sm:$0xff]
        %v950 = vld [vmem:[%s2 + $0x60] sm:$0xff]
        %v951 = vld [vmem:[%s2 + $0x68] sm:$0xff]
        %v952 = vld [vmem:[%s2 + $0x70] sm:$0xff]
        %v953 = vld [vmem:[%s2 + $0x78] sm:$0xff]
        %v954 = vld [vmem:[%s2 + $0x80] sm:$0xff]
        %v955 = vld [vmem:[%s2 + $0x88] sm:$0xff]
        %v956 = vld [vmem:[%s2 + $0x90] sm:$0xff]
        %v957 = vld [vmem:[%s2 + $0x98] sm:$0xff]
        %v958 = vld [vmem:[%s2 + $0xa0] sm:$0xff]
        %v959 = vld [vmem:[%s2 + $0xa8] sm:$0xff]
        %v960 = vld [vmem:[%s2 + $0xb0] sm:$0xff]
        %v961 = vld [vmem:[%s2 + $0xb8] sm:$0xff]
        %v962 = vld [vmem:[%s2 + $0xc0] sm:$0xff]
        %v963 = vld [vmem:[%s2 + $0xc8] sm:$0xff]
        %v964 = vld [vmem:[%s2 + $0xd0] sm:$0xff]
        %v965 = vld [vmem:[%s2 + $0xd8] sm:$0xff]
        %v966 = vld [vmem:[%s2 + $0xe0] sm:$0xff]
        %v967 = vld [vmem:[%s2 + $0xe8] sm:$0xff]
        %v968 = vld [vmem:[%s2 + $0xf0] sm:$0xff]
        %v969 = vld [vmem:[%s2 + $0xf8] sm:$0xff]
        %970 = vmatprep.subr.mxu0 0.0
        %971 = vmatpush1.msra.mxu0 %v953
        %972 = vmatprep.subr.mxu0 0.0
        %973 = vmatpush1.msra.mxu0 %v952
        %974 = vmatprep.subr.mxu0 0.0
        %975 = vmatpush1.msra.mxu0 %v951
        %976 = vmatprep.subr.mxu0 0.0
        %977 = vmatpush1.msra.mxu0 %v950
        %978 = vmatprep.subr.mxu0 0.0
        %979 = vmatpush1.msra.mxu0 %v949
        %980 = vmatprep.subr.mxu0 0.0
        %981 = vmatpush1.msra.mxu0 %v948
        %982 = vmatprep.subr.mxu0 0.0
        %983 = vmatpush1.msra.mxu0 %v947
        %984 = vmatprep.subr.mxu0 0.0
        %985 = vmatpush1.msra.mxu0 %v946
        %986 = vmatprep.subr.mxu0 0.0
        %987 = vmatpush1.msra.mxu0 %v945
        %988 = vmatprep.subr.mxu0 0.0
        %989 = vmatpush1.msra.mxu0 %v944
        %990 = vmatprep.subr.mxu0 0.0
        %991 = vmatpush1.msra.mxu0 %v943
        %992 = vmatprep.subr.mxu0 0.0
        %993 = vmatpush1.msra.mxu0 %v942
        %994 = vmatprep.subr.mxu0 0.0
        %995 = vmatpush1.msra.mxu0 %v941
        %996 = vmatprep.subr.mxu0 0.0
        %997 = vmatpush1.msra.mxu0 %v940
        %998 = vmatprep.subr.mxu0 0.0
        %999 = vmatpush1.msra.mxu0 %v939
        %1000 = vmatprep.subr.mxu0 0.0
        %1001 = vmatpush1.msra.mxu0 %v938
        %1002 = vmatprep.subr.mxu0 0.0
        %1003 = vmatpush2.msra.mxu0 %v969
        %1004 = vmatprep.subr.mxu0 0.0
        %1005 = vmatpush2.msra.mxu0 %v968
        %1006 = vmatprep.subr.mxu0 0.0
        %1007 = vmatpush2.msra.mxu0 %v967
        %1008 = vmatprep.subr.mxu0 0.0
        %1009 = vmatpush2.msra.mxu0 %v966
        %1010 = vmatprep.subr.mxu0 0.0
        %1011 = vmatpush2.msra.mxu0 %v965
        %1012 = vmatprep.subr.mxu0 0.0
        %1013 = vmatpush2.msra.mxu0 %v964
        %1014 = vmatprep.subr.mxu0 0.0
        %1015 = vmatpush2.msra.mxu0 %v963
        %1016 = vmatprep.subr.mxu0 0.0
        %1017 = vmatpush2.msra.mxu0 %v962
        %1018 = vmatprep.subr.mxu0 0.0
        %1019 = vmatpush2.msra.mxu0 %v961
        %1020 = vmatprep.subr.mxu0 0.0
        %1021 = vmatpush2.msra.mxu0 %v960
        %1022 = vmatprep.subr.mxu0 0.0
        %1023 = vmatpush2.msra.mxu0 %v959
        %1024 = vmatprep.subr.mxu0 0.0
        %1025 = vmatpush2.msra.mxu0 %v958
        %1026 = vmatprep.subr.mxu0 0.0
        %1027 = vmatpush2.msra.mxu0 %v957
        %1028 = vmatprep.subr.mxu0 0.0
        %1029 = vmatpush2.msra.mxu0 %v956
        %1030 = vmatprep.subr.mxu0 0.0
        %1031 = vmatpush2.msra.mxu0 %v955
        %1032 = vmatprep.subr.mxu0 0.0
        %1033 = vmatpush2.msra.mxu0 %v954
        %1034 = vmatprep.mubr.f32.mxu0 %v863
        %1035 = vmatmul.mubr.f32.gmra.mxu0 %v861
        %v1036 = vpop.f32.mrf.mxu0
        %v1037 = vadd.f32 0.0, %v1036
        %v1038 = vpop.f32.mrf.mxu0
        %1039 = vdwg.mxu0
        %1040 = vmatprep.subr.mxu0 0.0
        %1041 = vmatpush1.msra.mxu0 %v584
        %1042 = vmatprep.subr.mxu0 0.0
        %1043 = vmatpush1.msra.mxu0 %v583
        %1044 = vmatprep.subr.mxu0 0.0
        %1045 = vmatpush1.msra.mxu0 %v582
        %1046 = vmatprep.subr.mxu0 0.0
        %1047 = vmatpush1.msra.mxu0 %v581
        %1048 = vmatprep.subr.mxu0 0.0
        %1049 = vmatpush1.msra.mxu0 %v580
        %1050 = vmatprep.subr.mxu0 0.0
        %1051 = vmatpush1.msra.mxu0 %v579
        %1052 = vmatprep.subr.mxu0 0.0
        %1053 = vmatpush1.msra.mxu0 %v578
        %1054 = vmatprep.subr.mxu0 0.0
        %1055 = vmatpush1.msra.mxu0 %v577
        %1056 = vmatprep.subr.mxu0 0.0
        %1057 = vmatpush1.msra.mxu0 %v576
        %1058 = vmatprep.subr.mxu0 0.0
        %1059 = vmatpush1.msra.mxu0 %v575
        %1060 = vmatprep.subr.mxu0 0.0
        %1061 = vmatpush1.msra.mxu0 %v574
        %1062 = vmatprep.subr.mxu0 0.0
        %1063 = vmatpush1.msra.mxu0 %v573
        %1064 = vmatprep.subr.mxu0 0.0
        %1065 = vmatpush1.msra.mxu0 %v572
        %1066 = vmatprep.subr.mxu0 0.0
        %1067 = vmatpush1.msra.mxu0 %v571
        %1068 = vmatprep.subr.mxu0 0.0
        %1069 = vmatpush1.msra.mxu0 %v570
        %1070 = vmatprep.subr.mxu0 0.0
        %1071 = vmatpush1.msra.mxu0 %v569
        %1072 = vmatprep.subr.mxu0 0.0
        %1073 = vmatpush2.msra.mxu0 %v600
        %1074 = vmatprep.subr.mxu0 0.0
        %1075 = vmatpush2.msra.mxu0 %v599
        %1076 = vmatprep.subr.mxu0 0.0
        %1077 = vmatpush2.msra.mxu0 %v598
        %1078 = vmatprep.subr.mxu0 0.0
        %1079 = vmatpush2.msra.mxu0 %v597
        %1080 = vmatprep.subr.mxu0 0.0
        %1081 = vmatpush2.msra.mxu0 %v596
        %1082 = vmatprep.subr.mxu0 0.0
        %1083 = vmatpush2.msra.mxu0 %v595
        %1084 = vmatprep.subr.mxu0 0.0
        %1085 = vmatpush2.msra.mxu0 %v594
        %1086 = vmatprep.subr.mxu0 0.0
        %1087 = vmatpush2.msra.mxu0 %v593
        %1088 = vmatprep.subr.mxu0 0.0
        %1089 = vmatpush2.msra.mxu0 %v592
        %1090 = vmatprep.subr.mxu0 0.0
        %1091 = vmatpush2.msra.mxu0 %v591
        %1092 = vmatprep.subr.mxu0 0.0
        %1093 = vmatpush2.msra.mxu0 %v590
        %1094 = vmatprep.subr.mxu0 0.0
        %1095 = vmatpush2.msra.mxu0 %v589
        %1096 = vmatprep.subr.mxu0 0.0
        %1097 = vmatpush2.msra.mxu0 %v588
        %1098 = vmatprep.subr.mxu0 0.0
        %1099 = vmatpush2.msra.mxu0 %v587
        %1100 = vmatprep.subr.mxu0 0.0
        %1101 = vmatpush2.msra.mxu0 %v586
        %1102 = vmatprep.subr.mxu0 0.0
        %1103 = vmatpush2.msra.mxu0 %v585
        %1104 = vmatprep.mubr.f32.mxu0 %v494
        %1105 = vmatmul.mubr.f32.gmra.mxu0 %v492
        %v1106 = vpop.f32.mrf.mxu0
        %v1107 = vadd.f32 %v1037, %v1106
        %v1108 = vpop.f32.mrf.mxu0
        %1109 = vdwg.mxu0
        %1110 = vmatprep.subr.mxu0 0.0
        %1111 = vmatpush1.msra.mxu0 %v953
        %1112 = vmatprep.subr.mxu0 0.0
        %1113 = vmatpush1.msra.mxu0 %v952
        %1114 = vmatprep.subr.mxu0 0.0
        %1115 = vmatpush1.msra.mxu0 %v951
        %1116 = vmatprep.subr.mxu0 0.0
        %1117 = vmatpush1.msra.mxu0 %v950
        %1118 = vmatprep.subr.mxu0 0.0
        %1119 = vmatpush1.msra.mxu0 %v949
        %1120 = vmatprep.subr.mxu0 0.0
        %1121 = vmatpush1.msra.mxu0 %v948
        %1122 = vmatprep.subr.mxu0 0.0
        %1123 = vmatpush1.msra.mxu0 %v947
        %1124 = vmatprep.subr.mxu0 0.0
        %1125 = vmatpush1.msra.mxu0 %v946
        %1126 = vmatprep.subr.mxu0 0.0
        %1127 = vmatpush1.msra.mxu0 %v945
        %1128 = vmatprep.subr.mxu0 0.0
        %1129 = vmatpush1.msra.mxu0 %v944
        %1130 = vmatprep.subr.mxu0 0.0
        %1131 = vmatpush1.msra.mxu0 %v943
        %1132 = vmatprep.subr.mxu0 0.0
        %1133 = vmatpush1.msra.mxu0 %v942
        %1134 = vmatprep.subr.mxu0 0.0
        %1135 = vmatpush1.msra.mxu0 %v941
        %1136 = vmatprep.subr.mxu0 0.0
        %1137 = vmatpush1.msra.mxu0 %v940
        %1138 = vmatprep.subr.mxu0 0.0
        %1139 = vmatpush1.msra.mxu0 %v939
        %1140 = vmatprep.subr.mxu0 0.0
        %1141 = vmatpush1.msra.mxu0 %v938
        %1142 = vmatprep.subr.mxu0 0.0
        %1143 = vmatpush2.msra.mxu0 %v969
        %1144 = vmatprep.subr.mxu0 0.0
        %1145 = vmatpush2.msra.mxu0 %v968
        %1146 = vmatprep.subr.mxu0 0.0
        %1147 = vmatpush2.msra.mxu0 %v967
        %1148 = vmatprep.subr.mxu0 0.0
        %1149 = vmatpush2.msra.mxu0 %v966
        %1150 = vmatprep.subr.mxu0 0.0
        %1151 = vmatpush2.msra.mxu0 %v965
        %1152 = vmatprep.subr.mxu0 0.0
        %1153 = vmatpush2.msra.mxu0 %v964
        %1154 = vmatprep.subr.mxu0 0.0
        %1155 = vmatpush2.msra.mxu0 %v963
        %1156 = vmatprep.subr.mxu0 0.0
        %1157 = vmatpush2.msra.mxu0 %v962
        %1158 = vmatprep.subr.mxu0 0.0
        %1159 = vmatpush2.msra.mxu0 %v961
        %1160 = vmatprep.subr.mxu0 0.0
        %1161 = vmatpush2.msra.mxu0 %v960
        %1162 = vmatprep.subr.mxu0 0.0
        %1163 = vmatpush2.msra.mxu0 %v959
        %1164 = vmatprep.subr.mxu0 0.0
        %1165 = vmatpush2.msra.mxu0 %v958
        %1166 = vmatprep.subr.mxu0 0.0
        %1167 = vmatpush2.msra.mxu0 %v957
        %1168 = vmatprep.subr.mxu0 0.0
        %1169 = vmatpush2.msra.mxu0 %v956
        %1170 = vmatprep.subr.mxu0 0.0
        %1171 = vmatpush2.msra.mxu0 %v955
        %1172 = vmatprep.subr.mxu0 0.0
        %1173 = vmatpush2.msra.mxu0 %v954
        %1174 = vmatprep.mubr.f32.mxu0 %v936
        %1175 = vmatmul.mubr.f32.gmra.mxu0 %v934
        %v1176 = vpop.f32.mrf.mxu0
        %v1177 = vadd.f32 0.0, %v1176
        %v1178 = vpop.f32.mrf.mxu0
        %1179 = vdwg.mxu0
        %1180 = vmatprep.subr.mxu0 0.0
        %1181 = vmatpush1.msra.mxu0 %v584
        %1182 = vmatprep.subr.mxu0 0.0
        %1183 = vmatpush1.msra.mxu0 %v583
        %1184 = vmatprep.subr.mxu0 0.0
        %1185 = vmatpush1.msra.mxu0 %v582
        %1186 = vmatprep.subr.mxu0 0.0
        %1187 = vmatpush1.msra.mxu0 %v581
        %1188 = vmatprep.subr.mxu0 0.0
        %1189 = vmatpush1.msra.mxu0 %v580
        %1190 = vmatprep.subr.mxu0 0.0
        %1191 = vmatpush1.msra.mxu0 %v579
        %1192 = vmatprep.subr.mxu0 0.0
        %1193 = vmatpush1.msra.mxu0 %v578
        %1194 = vmatprep.subr.mxu0 0.0
        %1195 = vmatpush1.msra.mxu0 %v577
        %1196 = vmatprep.subr.mxu0 0.0
        %1197 = vmatpush1.msra.mxu0 %v576
        %1198 = vmatprep.subr.mxu0 0.0
        %1199 = vmatpush1.msra.mxu0 %v575
        %1200 = vmatprep.subr.mxu0 0.0
        %1201 = vmatpush1.msra.mxu0 %v574
        %1202 = vmatprep.subr.mxu0 0.0
        %1203 = vmatpush1.msra.mxu0 %v573
        %1204 = vmatprep.subr.mxu0 0.0
        %1205 = vmatpush1.msra.mxu0 %v572
        %1206 = vmatprep.subr.mxu0 0.0
        %1207 = vmatpush1.msra.mxu0 %v571
        %1208 = vmatprep.subr.mxu0 0.0
        %1209 = vmatpush1.msra.mxu0 %v570
        %1210 = vmatprep.subr.mxu0 0.0
        %1211 = vmatpush1.msra.mxu0 %v569
        %1212 = vmatprep.subr.mxu0 0.0
        %1213 = vmatpush2.msra.mxu0 %v600
        %1214 = vmatprep.subr.mxu0 0.0
        %1215 = vmatpush2.msra.mxu0 %v599
        %1216 = vmatprep.subr.mxu0 0.0
        %1217 = vmatpush2.msra.mxu0 %v598
        %1218 = vmatprep.subr.mxu0 0.0
        %1219 = vmatpush2.msra.mxu0 %v597
        %1220 = vmatprep.subr.mxu0 0.0
        %1221 = vmatpush2.msra.mxu0 %v596
        %1222 = vmatprep.subr.mxu0 0.0
        %1223 = vmatpush2.msra.mxu0 %v595
        %1224 = vmatprep.subr.mxu0 0.0
        %1225 = vmatpush2.msra.mxu0 %v594
        %1226 = vmatprep.subr.mxu0 0.0
        %1227 = vmatpush2.msra.mxu0 %v593
        %1228 = vmatprep.subr.mxu0 0.0
        %1229 = vmatpush2.msra.mxu0 %v592
        %1230 = vmatprep.subr.mxu0 0.0
        %1231 = vmatpush2.msra.mxu0 %v591
        %1232 = vmatprep.subr.mxu0 0.0
        %1233 = vmatpush2.msra.mxu0 %v590
        %1234 = vmatprep.subr.mxu0 0.0
        %1235 = vmatpush2.msra.mxu0 %v589
        %1236 = vmatprep.subr.mxu0 0.0
        %1237 = vmatpush2.msra.mxu0 %v588
        %1238 = vmatprep.subr.mxu0 0.0
        %1239 = vmatpush2.msra.mxu0 %v587
        %1240 = vmatprep.subr.mxu0 0.0
        %1241 = vmatpush2.msra.mxu0 %v586
        %1242 = vmatprep.subr.mxu0 0.0
        %1243 = vmatpush2.msra.mxu0 %v585
        %1244 = vmatprep.mubr.f32.mxu0 %v567
        %1245 = vmatmul.mubr.f32.gmra.mxu0 %v565
        %v1246 = vpop.f32.mrf.mxu0
        %v1247 = vadd.f32 %v1177, %v1246
        %v1248 = vpop.f32.mrf.mxu0
        %1249 = vdwg.mxu0
        %v1251 = vrot.slane %v1247, 7
        %vm1253 = vcmask 1040384
        %v1254 = vsel %vm1253, %v1107, %v1251
        %vm1255 = vcmask 58368
        %1256 = vst.msk [vmem:[%s226] sm:$0x3] %vm1255, %v1254
        %s1257 = sand.u32 %s106, 1
        %s1258 = sand.u32 %s106, 1
        %s1259 = smul.addr %s1258, 32
        %s1260 = scalar_lea.vmem [#allocation2], %s1259
        %p1261 = scmp.lt.s32.totalorder %s20, 1
        %s1262 = scalar_select %p1261, %s20, 1
        %p1263 = scmp.lt.s32.totalorder %s21, 1
        %s1264 = scalar_select %p1263, %s21, 1
        %s1265 = smul.addr %s1262, 2
        %s1266 = sadd.s32 %s1264, %s1265
        %s1267 = smul.addr %s1266, 2
        %s1268 = scalar_lea.vmem %s4, %s1267
        // Predicated region
        $region33: #{upblock_forward.2} parent=31 // pred_check
          %p1269 = pneg %p116
        $region34: #{upblock_forward.2} parent=31 // pred_check_branch
          %1271 = sbr.rel (%p1269) target = $region36
        $region35: #{upblock_forward.2} parent=31 // pred_region
          %s1272 = smul.addr %s21, 2
          %s1273 = smul.addr %s20, 4
          %s1274 = sadd.s32 %s1272, %s1273
          %s1275 = smul.addr %s1274, 8
          %s1276 = scalar_lea.vmem %s3, %s1275
          // Predicated region
          $region37: #{upblock_forward.2} parent=35 // pred_check
            _
          $region38: #{upblock_forward.2} parent=35 // pred_check_branch
            %1278 = sbr.rel (0) target = $region40
          $region39: #{upblock_forward.2} parent=35 // pred_region
            // Predicated region
            $region41: #{upblock_forward.2} parent=39 // pred_check
              _
            $region42: #{upblock_forward.2} parent=39 // pred_check_branch
              %1280 = sbr.rel (0) target = $region44
            $region43: #{upblock_forward.2} parent=39 // pred_region
              loop: start=0, step=1, limit=1
              $region45: #{upblock_forward.2} parent=43 // loop_pre_header
                _
              $region46: #{upblock_forward.2} parent=43 // loop_header
                %s1282 = sphi 0, %s1286
                %p1283 = scmp.ge.s32.totalorder %s1282, 1
                %s1287 = sphi %s1260, %s1260
                %s1288 = sphi %s1276, %s1276
              $region47: #{upblock_forward.2} parent=43 // loop_header_branch
                %1285 = sbr.rel (%p1283) target = $region51
              $region48: #{upblock_forward.2} parent=43 // loop_body
                %v1289 = vld [vmem:[%s1287] sm:$0xff]
                %1290 = vst [vmem:[%s1288] sm:$0xff] %v1289
                %v1291 = vld [vmem:[%s1287 + $0x8] sm:$0xff]
                %1292 = vst [vmem:[%s1288 + $0x8] sm:$0xff] %v1291
                %v1293 = vld [vmem:[%s1287 + $0x10] sm:$0xff]
                %1294 = vst [vmem:[%s1288 + $0x40] sm:$0xff] %v1293
                %v1295 = vld [vmem:[%s1287 + $0x18] sm:$0xff]
                %1296 = vst [vmem:[%s1288 + $0x48] sm:$0xff] %v1295
              $region49: #{upblock_forward.2} parent=43 // loop_footer
                %s1286 = sadd.s32 1, %s1282
              $region50: #{upblock_forward.2} parent=43 // loop_footer_branch
                %1281 = sbr.rel target = $region46
              $region51: #{upblock_forward.2} parent=43 // loop_exit
                _
            $region44: #{upblock_forward.2} parent=39 // pred_fallthru
              _
            // Predicated region
            $region52: #{upblock_forward.2} parent=39 // pred_check
              _
            $region53: #{upblock_forward.2} parent=39 // pred_check_branch
              %1298 = sbr.rel target = $region55
            $region54: #{upblock_forward.2} parent=39 // pred_region
              _
            $region55: #{upblock_forward.2} parent=39 // pred_fallthru
              _
          $region40: #{upblock_forward.2} parent=35 // pred_fallthru
            _
          %1299 = vnop
        $region36: #{upblock_forward.2} parent=31 // pred_fallthru
          _
        // Predicated region
        $region56: #{upblock_forward.2} parent=31 // pred_check
          %p1300 = pneg %p144
        $region57: #{upblock_forward.2} parent=31 // pred_check_branch
          %1302 = sbr.rel (%p1300) target = $region59
        $region58: #{upblock_forward.2} parent=31 // pred_region
          _
        $region59: #{upblock_forward.2} parent=31 // pred_fallthru
          _
      $region32: #{upblock_forward.2} parent=5 // pred_fallthru
        _
      %p1303 = scmp.le.s32.totalorder 2, %s11
      // Predicated region
      $region60: #{upblock_forward.2} parent=5 // pred_check
        %p1304 = pneg %p1303
      $region61: #{upblock_forward.2} parent=5 // pred_check_branch
        %1306 = sbr.rel (%p1304) target = $region63
      $region62: #{upblock_forward.2} parent=5 // pred_region
        %s1307 = ssub.s32 %s11, 2
        // Predicated region
        $region64: #{upblock_forward.2} parent=62 // pred_check
          %p1308 = pneg %p122
        $region65: #{upblock_forward.2} parent=62 // pred_check_branch
          %1310 = sbr.rel (%p1308) target = $region67
        $region66: #{upblock_forward.2} parent=62 // pred_region
          %s1311 = sand.u32 %s107, 1
          %s1312 = sand.u32 %s107, 1
          %s1313 = smul.addr %s1312, 32
          %s1314 = scalar_lea.vmem [#allocation2], %s1313
        $region67: #{upblock_forward.2} parent=62 // pred_fallthru
          _
        // Predicated region
        $region68: #{upblock_forward.2} parent=62 // pred_check
          %p1315 = pneg %p150
        $region69: #{upblock_forward.2} parent=62 // pred_check_branch
          %1317 = sbr.rel (%p1315) target = $region71
        $region70: #{upblock_forward.2} parent=62 // pred_region
          %p1318 = scmp.lt.s32.totalorder %s22, 1
          %s1319 = scalar_select %p1318, %s22, 1
          %p1320 = scmp.lt.s32.totalorder %s23, 1
          %s1321 = scalar_select %p1320, %s23, 1
          %s1322 = smul.addr %s1319, 2
          %s1323 = sadd.s32 %s1321, %s1322
          %s1324 = smul.addr %s1323, 2
          %s1325 = scalar_lea.vmem %s4, %s1324
        $region71: #{upblock_forward.2} parent=62 // pred_fallthru
          _
      $region63: #{upblock_forward.2} parent=5 // pred_fallthru
        _
    $region6: #{upblock_forward.2} parent=1 // loop_footer
      %s15 = sadd.s32 1, %s11
    $region7: #{upblock_forward.2} parent=1 // loop_footer_branch
      %10 = sbr.rel target = $region3
    $region8: #{upblock_forward.2} parent=1 // loop_exit
      _

// kernel: tile.23
$region0: #{tile.23}
  #allocation0 [shape = 's32[1]{0}', space=sflag, size = 0x4, scoped, tag = 'scoped memory for tile.23']
  %s0 = inlined_call_operand.vmem [shape: f32[8], index: 0, kind: input, shape index: {}]
  %s1 = inlined_call_operand.vmem [shape: f32[32,8], index: 1, kind: output, shape index: {}]
  // Predicated region
  $region2: #{tile.23} parent=0 // pred_check
    _
  $region3: #{tile.23} parent=0 // pred_check_branch
    %3 = sbr.rel (0) target = $region5
  $region4: #{tile.23} parent=0 // pred_region
    _
  $region5: #{tile.23} parent=0 // pred_fallthru
    _
  %v4 = vld [vmem:[%s0] ss:$0 sm:$0xff]
  %5 = vst [vmem:[%s1] sm:$0xff] %v4
  %s6 = scalar_lea.vmem %s1, 8
  %7 = vst [vmem:[%s6] sm:$0xff] %v4
  %s8 = scalar_lea.vmem %s1, 16
  %9 = vst [vmem:[%s8] sm:$0xff] %v4
  %s10 = scalar_lea.vmem %s1, 24
  %11 = vst [vmem:[%s10] sm:$0xff] %v4

// kernel: tile.24
$region0: #{tile.24}
  %s0 = inlined_call_operand.vmem [shape: f32[32,8], index: 0, kind: input, shape index: {}]
  %s1 = inlined_call_operand.vmem [shape: f32[1,256], index: 1, kind: output, shape index: {}]
  $region1: #{tile.24} parent=0
    #allocation0 [shape = 'u8[8192]{0}', space=vmem, size = 0x2000, scoped, tag = 'scoped mem for output reshape']
    %s2 = smov 3
    %v3 = vld [vmem:[%s0] ss:$16 sm:%s2]
    %vm4 = vcmask 64512
    %5 = vst.msk [vmem:[#allocation0] ss:$8 sm:$0x3] %vm4, %v3
    %s6 = scalar_lea.vmem %s0, 15
    %s7 = smov 3
    %v8 = vld [vmem:[%s6] ss:$16 sm:%s7]
    %9 = vrot.lane.b32.xlu0 %v8, 120
    %v10 = vpop.permute.xlu0 %9
    %vm11 = vcmask 1048512
    %12 = vst.msk [vmem:[#allocation0] ss:$8 sm:$0x3] %vm11, %v10
    %s13 = scalar_lea.vmem %s0, 14
    %s14 = smov 3
    %v15 = vld [vmem:[%s13] ss:$16 sm:%s14]
    %16 = vrot.lane.b32.xlu0 %v15, 112
    %v17 = vpop.permute.xlu0 %16
    %vm18 = vcmask 982912
    %19 = vst.msk [vmem:[#allocation0] ss:$8 sm:$0x3] %vm18, %v17
    %s20 = scalar_lea.vmem %s0, 13
    %s21 = smov 3
    %v22 = vld [vmem:[%s20] ss:$16 sm:%s21]
    %23 = vrot.lane.b32.xlu0 %v22, 104
    %v24 = vpop.permute.xlu0 %23
    %vm25 = vcmask 917312
    %26 = vst.msk [vmem:[#allocation0] ss:$8 sm:$0x3] %vm25, %v24
    %s27 = scalar_lea.vmem %s0, 12
    %s28 = smov 3
    %v29 = vld [vmem:[%s27] ss:$16 sm:%s28]
    %30 = vrot.lane.b32.xlu0 %v29, 96
    %v31 = vpop.permute.xlu0 %30
    %vm32 = vcmask 851712
    %33 = vst.msk [vmem:[#allocation0] ss:$8 sm:$0x3] %vm32, %v31
    %s34 = scalar_lea.vmem %s0, 11
    %s35 = smov 3
    %v36 = vld [vmem:[%s34] ss:$16 sm:%s35]
    %37 = vrot.lane.b32.xlu0 %v36, 88
    %v38 = vpop.permute.xlu0 %37
    %vm39 = vcmask 786112
    %40 = vst.msk [vmem:[#allocation0] ss:$8 sm:$0x3] %vm39, %v38
    %s41 = scalar_lea.vmem %s0, 10
    %s42 = smov 3
    %v43 = vld [vmem:[%s41] ss:$16 sm:%s42]
    %44 = vrot.lane.b32.xlu0 %v43, 80
    %v45 = vpop.permute.xlu0 %44
    %vm46 = vcmask 720512
    %47 = vst.msk [vmem:[#allocation0] ss:$8 sm:$0x3] %vm46, %v45
    %s48 = scalar_lea.vmem %s0, 9
    %s49 = smov 3
    %v50 = vld [vmem:[%s48] ss:$16 sm:%s49]
    %51 = vrot.lane.b32.xlu0 %v50, 72
    %v52 = vpop.permute.xlu0 %51
    %vm53 = vcmask 654912
    %54 = vst.msk [vmem:[#allocation0] ss:$8 sm:$0x3] %vm53, %v52
    %s55 = scalar_lea.vmem %s0, 8
    %s56 = smov 3
    %v57 = vld [vmem:[%s55] ss:$16 sm:%s56]
    %58 = vrot.lane.b32.xlu0 %v57, 64
    %v59 = vpop.permute.xlu0 %58
    %vm60 = vcmask 589312
    %61 = vst.msk [vmem:[#allocation0] ss:$8 sm:$0x3] %vm60, %v59
    %s62 = scalar_lea.vmem %s0, 7
    %s63 = smov 3
    %v64 = vld [vmem:[%s62] ss:$16 sm:%s63]
    %65 = vrot.lane.b32.xlu0 %v64, 56
    %v66 = vpop.permute.xlu0 %65
    %vm67 = vcmask 523712
    %68 = vst.msk [vmem:[#allocation0] ss:$8 sm:$0x3] %vm67, %v66
    %s69 = scalar_lea.vmem %s0, 6
    %s70 = smov 3
    %v71 = vld [vmem:[%s69] ss:$16 sm:%s70]
    %72 = vrot.lane.b32.xlu0 %v71, 48
    %v73 = vpop.permute.xlu0 %72
    %vm74 = vcmask 458112
    %75 = vst.msk [vmem:[#allocation0] ss:$8 sm:$0x3] %vm74, %v73
    %s76 = scalar_lea.vmem %s0, 5
    %s77 = smov 3
    %v78 = vld [vmem:[%s76] ss:$16 sm:%s77]
    %79 = vrot.lane.b32.xlu0 %v78, 40
    %v80 = vpop.permute.xlu0 %79
    %vm81 = vcmask 392512
    %82 = vst.msk [vmem:[#allocation0] ss:$8 sm:$0x3] %vm81, %v80
    %s83 = scalar_lea.vmem %s0, 4
    %s84 = smov 3
    %v85 = vld [vmem:[%s83] ss:$16 sm:%s84]
    %86 = vrot.lane.b32.xlu0 %v85, 32
    %v87 = vpop.permute.xlu0 %86
    %vm88 = vcmask 326912
    %89 = vst.msk [vmem:[#allocation0] ss:$8 sm:$0x3] %vm88, %v87
    %s90 = scalar_lea.vmem %s0, 3
    %s91 = smov 3
    %v92 = vld [vmem:[%s90] ss:$16 sm:%s91]
    %93 = vrot.lane.b32.xlu0 %v92, 24
    %v94 = vpop.permute.xlu0 %93
    %vm95 = vcmask 261312
    %96 = vst.msk [vmem:[#allocation0] ss:$8 sm:$0x3] %vm95, %v94
    %s97 = scalar_lea.vmem %s0, 2
    %s98 = smov 3
    %v99 = vld [vmem:[%s97] ss:$16 sm:%s98]
    %100 = vrot.lane.b32.xlu0 %v99, 16
    %v101 = vpop.permute.xlu0 %100
    %vm102 = vcmask 195712
    %103 = vst.msk [vmem:[#allocation0] ss:$8 sm:$0x3] %vm102, %v101
    %s104 = scalar_lea.vmem %s0, 1
    %s105 = smov 3
    %v106 = vld [vmem:[%s104] ss:$16 sm:%s105]
    %107 = vrot.lane.b32.xlu0 %v106, 8
    %v108 = vpop.permute.xlu0 %107
    %vm109 = vcmask 130112
    %110 = vst.msk [vmem:[#allocation0] ss:$8 sm:$0x3] %vm109, %v108
    %s112 = sshll.u32 1, 1
    %s113 = ssub.s32 %s112, 1
    %v115 = vld [vmem:[#allocation0] sm:%s113]
    %s116 = sshll.u32 1, 1
    %s117 = ssub.s32 %s116, 1
    %118 = vst [vmem:[%s1] sm:%s117] %v115
    %s119 = scalar_lea.vmem [#allocation0], 8
    %v120 = vld [vmem:[%s119] sm:%s113]
    %s121 = sshll.u32 1, 1
    %s122 = ssub.s32 %s121, 1
    %s123 = scalar_lea.vmem %s1, 1
    %124 = vst [vmem:[%s123] sm:%s122] %v120

// kernel: upblock_forward.3
$region0: #{upblock_forward.3}
  #allocation0 [shape = 'u32[]', space=smem, size = 0x4, offset = 0x4, fixed_abs, tag = 'smem constant byte address 0x4 - core index']
  #allocation1 [shape = 'u32[144,128]{1,0:T(1,128)}', space=vmem, size = 0x12000, scoped, tag = 'internal scratch']
  %s0 = inlined_call_operand.vmem [shape: f32[2,2,16,256], index: 0, kind: input, shape index: {}]
  %s1 = inlined_call_operand.vmem [shape: f32[1,256], index: 1, kind: input, shape index: {}]
  %s2 = inlined_call_operand.vmem [shape: f32[1,256], index: 2, kind: input, shape index: {}]
  %s3 = inlined_call_operand.vmem [shape: f32[2,2,16,256], index: 3, kind: output, shape index: {}]
  %s4 = sld [smem:[#allocation0]]
  $region87: #{upblock_forward.3} parent=0
    _
  %s6 = ssub.s32 1, %s4
  %s7 = scalar_select 0, %s6, %s4
  $region1: #{upblock_forward.3} parent=0
    #allocation2 [shape = 'u8[32768]{0}', space=vmem, size = 0x8000, scoped, tag = 'input window, operand 0']
    #allocation3 [shape = 'u8[32768]{0}', space=vmem, size = 0x8000, scoped, tag = 'output window, operand 0']
    loop: start=0, step=1, limit=6
    $region2: #{upblock_forward.3} parent=1 // loop_pre_header
      _
    $region3: #{upblock_forward.3} parent=1 // loop_header
      %s9 = sphi 0, %s13
      %p10 = scmp.ge.s32.totalorder %s9, 6
      %s16 = sphi 0, %s28
      %s17 = sphi 0, %s24
      %s18 = sphi 0, %s16
      %s19 = sphi 0, %s17
      %s20 = sphi 0, %s18
      %s21 = sphi 0, %s19
      %s33 = sphi 0, %s35
      %s36 = sphi 0, %s33
      %s37 = sphi 0, %s36
      %s53 = sphi 0, %s37
      %s57 = sphi 0, %s57
      %s59 = sphi 0, %s57
      %s60 = sphi 0, %s59
      %s74 = sphi 0, %s60
      %s78 = sphi 0, %s78
      %s80 = sphi 0, %s78
      %s81 = sphi 0, %s80
      %s95 = sphi 0, %s81
      %s103 = sphi 0, %s105
      %s106 = sphi 0, %s103
      %s107 = sphi 0, %s106
      %s123 = sphi 0, %s107
    $region4: #{upblock_forward.3} parent=1 // loop_header_branch
      %12 = sbr.rel (%p10) target = $region8
    $region5: #{upblock_forward.3} parent=1 // loop_body
      %s14 = ssub.s32 %s9, 1
      %s15 = ssub.s32 %s9, 2
      %s22 = sadd.s32 1, %s17
      %p23 = scmp.ge.s32.totalorder %s22, 2
      %s24 = scalar_select %p23, 0, %s22
      %s25 = sadd.s32 1, %s16
      %s26 = scalar_select %p23, %s25, %s16
      %p27 = scmp.ge.s32.totalorder %s26, 2
      %s28 = scalar_select %p27, 0, %s26
      %s29 = ssub.s32 %s16, %s28
      %s30 = ssub.s32 %s17, %s24
      %s31 = sor.u32 %s29, %s30
      %p32 = scmp.eq.s32.totalorder %s31, 0
      %s34 = sadd.s32 %s33, 1
      %s35 = scalar_select %p32, %s33, %s34
      %p38 = pneg %p32
      %p39 = scmp.eq.s32.totalorder %s9, 3
      %p40 = por %p38, %p39
      %p41 = scmp.ne.s32.totalorder %s33, %s36
      %p42 = scmp.eq.s32.totalorder %s9, 0
      %p43 = por %p41, %p42
      %p44 = scmp.ne.s32.totalorder %s33, %s36
      %p45 = scmp.eq.s32.totalorder %s14, 3
      %p46 = por %p44, %p45
      %p47 = scmp.ne.s32.totalorder %s36, %s37
      %p48 = scmp.eq.s32.totalorder %s14, 0
      %p49 = por %p47, %p48
      %p50 = scmp.ne.s32.totalorder %s36, %s37
      %p51 = scmp.eq.s32.totalorder %s15, 3
      %p52 = por %p50, %p51
      %p54 = scmp.ne.s32.totalorder %s37, %s53
      %p55 = scmp.eq.s32.totalorder %s15, 0
      %p56 = por %p54, %p55
      %s58 = sadd.s32 %s57, 1
      %p61 = scmp.eq.s32.totalorder %s9, 3
      %p62 = scmp.ne.s32.totalorder %s57, %s59
      %p63 = scmp.eq.s32.totalorder %s9, 0
      %p64 = por %p62, %p63
      %p65 = scmp.ne.s32.totalorder %s57, %s59
      %p66 = scmp.eq.s32.totalorder %s14, 3
      %p67 = por %p65, %p66
      %p68 = scmp.ne.s32.totalorder %s59, %s60
      %p69 = scmp.eq.s32.totalorder %s14, 0
      %p70 = por %p68, %p69
      %p71 = scmp.ne.s32.totalorder %s59, %s60
      %p72 = scmp.eq.s32.totalorder %s15, 3
      %p73 = por %p71, %p72
      %p75 = scmp.ne.s32.totalorder %s60, %s74
      %p76 = scmp.eq.s32.totalorder %s15, 0
      %p77 = por %p75, %p76
      %s79 = sadd.s32 %s78, 1
      %p82 = scmp.eq.s32.totalorder %s9, 3
      %p83 = scmp.ne.s32.totalorder %s78, %s80
      %p84 = scmp.eq.s32.totalorder %s9, 0
      %p85 = por %p83, %p84
      %p86 = scmp.ne.s32.totalorder %s78, %s80
      %p87 = scmp.eq.s32.totalorder %s14, 3
      %p88 = por %p86, %p87
      %p89 = scmp.ne.s32.totalorder %s80, %s81
      %p90 = scmp.eq.s32.totalorder %s14, 0
      %p91 = por %p89, %p90
      %p92 = scmp.ne.s32.totalorder %s80, %s81
      %p93 = scmp.eq.s32.totalorder %s15, 3
      %p94 = por %p92, %p93
      %p96 = scmp.ne.s32.totalorder %s81, %s95
      %p97 = scmp.eq.s32.totalorder %s15, 0
      %p98 = por %p96, %p97
      %s99 = ssub.s32 %s16, %s28
      %s100 = ssub.s32 %s17, %s24
      %s101 = sor.u32 %s99, %s100
      %p102 = scmp.eq.s32.totalorder %s101, 0
      %s104 = sadd.s32 %s103, 1
      %s105 = scalar_select %p102, %s103, %s104
      %p108 = pneg %p102
      %p109 = scmp.eq.s32.totalorder %s9, 3
      %p110 = por %p108, %p109
      %p111 = scmp.ne.s32.totalorder %s103, %s106
      %p112 = scmp.eq.s32.totalorder %s9, 0
      %p113 = por %p111, %p112
      %p114 = scmp.ne.s32.totalorder %s103, %s106
      %p115 = scmp.eq.s32.totalorder %s14, 3
      %p116 = por %p114, %p115
      %p117 = scmp.ne.s32.totalorder %s106, %s107
      %p118 = scmp.eq.s32.totalorder %s14, 0
      %p119 = por %p117, %p118
      %p120 = scmp.ne.s32.totalorder %s106, %s107
      %p121 = scmp.eq.s32.totalorder %s15, 3
      %p122 = por %p120, %p121
      %p124 = scmp.ne.s32.totalorder %s107, %s123
      %p125 = scmp.eq.s32.totalorder %s15, 0
      %p126 = por %p124, %p125
      %p127 = scmp.le.s32.totalorder 1, %s9
      %p128 = scmp.lt.s32.totalorder %s9, 5
      %p129 = pnand %p127, %p128
      %p130 = pneg %p129
      // Predicated region
      $region9: #{upblock_forward.3} parent=5 // pred_check
        _
      $region10: #{upblock_forward.3} parent=5 // pred_check_branch
        %132 = sbr.rel (%p129) target = $region12
      $region11: #{upblock_forward.3} parent=5 // pred_region
        %s133 = ssub.s32 %s9, 1
        // Predicated region
        $region13: #{upblock_forward.3} parent=11 // pred_check
          %p134 = pneg %p70
        $region14: #{upblock_forward.3} parent=11 // pred_check_branch
          %136 = sbr.rel (%p134) target = $region16
        $region15: #{upblock_forward.3} parent=11 // pred_region
          _
        $region16: #{upblock_forward.3} parent=11 // pred_fallthru
          _
        // Predicated region
        $region17: #{upblock_forward.3} parent=11 // pred_check
          %p137 = pneg %p91
        $region18: #{upblock_forward.3} parent=11 // pred_check_branch
          %139 = sbr.rel (%p137) target = $region20
        $region19: #{upblock_forward.3} parent=11 // pred_region
          _
        $region20: #{upblock_forward.3} parent=11 // pred_fallthru
          _
      $region12: #{upblock_forward.3} parent=5 // pred_fallthru
        _
      %p140 = scmp.lt.s32.totalorder %s9, 4
      // Predicated region
      $region21: #{upblock_forward.3} parent=5 // pred_check
        %p141 = pneg %p140
      $region22: #{upblock_forward.3} parent=5 // pred_check_branch
        %143 = sbr.rel (%p141) target = $region24
      $region23: #{upblock_forward.3} parent=5 // pred_region
        // Predicated region
        $region25: #{upblock_forward.3} parent=23 // pred_check
          %p144 = pneg %p43
        $region26: #{upblock_forward.3} parent=23 // pred_check_branch
          %146 = sbr.rel (%p144) target = $region28
        $region27: #{upblock_forward.3} parent=23 // pred_region
          %s147 = sand.u32 %s33, 1
          %s148 = sand.u32 %s33, 1
          %s149 = smul.addr %s148, 32
          %s150 = scalar_lea.vmem [#allocation2], %s149
          %s151 = smul.addr %s17, 2
          %s152 = smul.addr %s16, 4
          %s153 = sadd.s32 %s151, %s152
          %s154 = smul.addr %s153, 8
          %s155 = scalar_lea.vmem %s0, %s154
          // Predicated region
          $region29: #{upblock_forward.3} parent=27 // pred_check
            _
          $region30: #{upblock_forward.3} parent=27 // pred_check_branch
            %157 = sbr.rel (0) target = $region32
          $region31: #{upblock_forward.3} parent=27 // pred_region
            // Predicated region
            $region33: #{upblock_forward.3} parent=31 // pred_check
              _
            $region34: #{upblock_forward.3} parent=31 // pred_check_branch
              %159 = sbr.rel (0) target = $region36
            $region35: #{upblock_forward.3} parent=31 // pred_region
              loop: start=0, step=1, limit=1
              $region37: #{upblock_forward.3} parent=35 // loop_pre_header
                _
              $region38: #{upblock_forward.3} parent=35 // loop_header
                %s161 = sphi 0, %s165
                %p162 = scmp.ge.s32.totalorder %s161, 1
                %s166 = sphi %s155, %s155
                %s167 = sphi %s150, %s150
              $region39: #{upblock_forward.3} parent=35 // loop_header_branch
                %164 = sbr.rel (%p162) target = $region43
              $region40: #{upblock_forward.3} parent=35 // loop_body
                %v168 = vld [vmem:[%s166] sm:$0xff]
                %169 = vst [vmem:[%s167] sm:$0xff] %v168
                %v170 = vld [vmem:[%s166 + $0x8] sm:$0xff]
                %171 = vst [vmem:[%s167 + $0x8] sm:$0xff] %v170
                %v172 = vld [vmem:[%s166 + $0x40] sm:$0xff]
                %173 = vst [vmem:[%s167 + $0x10] sm:$0xff] %v172
                %v174 = vld [vmem:[%s166 + $0x48] sm:$0xff]
                %175 = vst [vmem:[%s167 + $0x18] sm:$0xff] %v174
              $region41: #{upblock_forward.3} parent=35 // loop_footer
                %s165 = sadd.s32 1, %s161
              $region42: #{upblock_forward.3} parent=35 // loop_footer_branch
                %160 = sbr.rel target = $region38
              $region43: #{upblock_forward.3} parent=35 // loop_exit
                _
            $region36: #{upblock_forward.3} parent=31 // pred_fallthru
              _
            // Predicated region
            $region44: #{upblock_forward.3} parent=31 // pred_check
              _
            $region45: #{upblock_forward.3} parent=31 // pred_check_branch
              %177 = sbr.rel target = $region47
            $region46: #{upblock_forward.3} parent=31 // pred_region
              _
            $region47: #{upblock_forward.3} parent=31 // pred_fallthru
              _
          $region32: #{upblock_forward.3} parent=27 // pred_fallthru
            _
          %178 = vnop
        $region28: #{upblock_forward.3} parent=23 // pred_fallthru
          _
      $region24: #{upblock_forward.3} parent=5 // pred_fallthru
        _
      %p179 = scmp.le.s32.totalorder 1, %s9
      %p180 = scmp.lt.s32.totalorder %s9, 5
      %p181 = pnand %p179, %p180
      %p182 = pneg %p181
      // Predicated region
      $region48: #{upblock_forward.3} parent=5 // pred_check
        _
      $region49: #{upblock_forward.3} parent=5 // pred_check_branch
        %184 = sbr.rel (%p181) target = $region51
      $region50: #{upblock_forward.3} parent=5 // pred_region
        %s185 = ssub.s32 %s9, 1
        %s186 = sand.u32 %s36, 1
        %s187 = sand.u32 %s36, 1
        %s188 = smul.addr %s187, 32
        %s189 = scalar_lea.vmem [#allocation2], %s188
        // Predicated region
        $region52: #{upblock_forward.3} parent=50 // pred_check
          %p190 = pneg %p49
        $region53: #{upblock_forward.3} parent=50 // pred_check_branch
          %192 = sbr.rel (%p190) target = $region55
        $region54: #{upblock_forward.3} parent=50 // pred_region
          _
        $region55: #{upblock_forward.3} parent=50 // pred_fallthru
          _
        %s193 = sand.u32 %s36, 1
        %s194 = sand.u32 %s36, 1
        %s195 = smul.addr %s194, 32
        %s196 = scalar_lea.vmem [#allocation2], %s195
        %p197 = pneg %p49
        %p198 = pneg %p46
        %p199 = pneg %p70
        %p200 = pneg %p67
        %p201 = pneg %p91
        %p202 = pneg %p88
        %p203 = pneg %p119
        %p204 = pneg %p116
        %s205 = sand.u32 %s106, 1
        %s206 = sand.u32 %s106, 1
        %s207 = smul.addr %s206, 32
        %s208 = scalar_lea.vmem [#allocation3], %s207
        %v209 = vld [vmem:[%s189] sm:$0xff]
        %v210 = vld [vmem:[%s189 + $0x8] sm:$0xff]
        %v211 = vld [vmem:[%s189 + $0x10] sm:$0xff]
        %v212 = vld [vmem:[%s189 + $0x18] sm:$0xff]
        %v213 = vld [vmem:[%s1] sm:$0x3]
        %v215 = vlaneseq
        %v216 = vshrl.u32 %v215, 7
        %v217 = vsub.s32 0, %v216
        %v218 = vrot.slane %v213, %v217
        %v219 = vlaneseq
        %v220 = vshrl.u32 %v219, 7
        %v221 = vsub.s32 1, %v220
        %v222 = vrot.slane %v213, %v221
        %v225 = vmul.f32 %v209, %v218
        %v226 = vmul.f32 %v210, %v222
        %v227 = vmul.f32 %v211, %v218
        %v228 = vmul.f32 %v212, %v222
        %v229 = vld [vmem:[%s2] sm:$0x3]
        %v231 = vlaneseq
        %v232 = vshrl.u32 %v231, 7
        %v233 = vsub.s32 0, %v232
        %v234 = vrot.slane %v229, %v233
        %v235 = vlaneseq
        %v236 = vshrl.u32 %v235, 7
        %v237 = vsub.s32 1, %v236
        %v238 = vrot.slane %v229, %v237
        %v241 = vadd.f32 %v225, %v234
        %v242 = vadd.f32 %v226, %v238
        %v243 = vadd.f32 %v227, %v234
        %v244 = vadd.f32 %v228, %v238
        %v245 = vmax.f32 %v241, 0.0
        %v246 = vmax.f32 %v242, 0.0
        %v247 = vmax.f32 %v243, 0.0
        %v248 = vmax.f32 %v244, 0.0
        %249 = vst [vmem:[%s208] sm:$0xff] %v245
        %250 = vst [vmem:[%s208 + $0x8] sm:$0xff] %v246
        %251 = vst [vmem:[%s208 + $0x10] sm:$0xff] %v247
        %252 = vst [vmem:[%s208 + $0x18] sm:$0xff] %v248
        %s253 = sand.u32 %s106, 1
        %s254 = sand.u32 %s106, 1
        %s255 = smul.addr %s254, 32
        %s256 = scalar_lea.vmem [#allocation3], %s255
        // Predicated region
        $region56: #{upblock_forward.3} parent=50 // pred_check
          %p257 = pneg %p116
        $region57: #{upblock_forward.3} parent=50 // pred_check_branch
          %259 = sbr.rel (%p257) target = $region59
        $region58: #{upblock_forward.3} parent=50 // pred_region
          %s260 = smul.addr %s19, 2
          %s261 = smul.addr %s18, 4
          %s262 = sadd.s32 %s260, %s261
          %s263 = smul.addr %s262, 8
          %s264 = scalar_lea.vmem %s3, %s263
          // Predicated region
          $region60: #{upblock_forward.3} parent=58 // pred_check
            _
          $region61: #{upblock_forward.3} parent=58 // pred_check_branch
            %266 = sbr.rel (0) target = $region63
          $region62: #{upblock_forward.3} parent=58 // pred_region
            // Predicated region
            $region64: #{upblock_forward.3} parent=62 // pred_check
              _
            $region65: #{upblock_forward.3} parent=62 // pred_check_branch
              %268 = sbr.rel (0) target = $region67
            $region66: #{upblock_forward.3} parent=62 // pred_region
              loop: start=0, step=1, limit=1
              $region68: #{upblock_forward.3} parent=66 // loop_pre_header
                _
              $region69: #{upblock_forward.3} parent=66 // loop_header
                %s270 = sphi 0, %s274
                %p271 = scmp.ge.s32.totalorder %s270, 1
                %s275 = sphi %s256, %s256
                %s276 = sphi %s264, %s264
              $region70: #{upblock_forward.3} parent=66 // loop_header_branch
                %273 = sbr.rel (%p271) target = $region74
              $region71: #{upblock_forward.3} parent=66 // loop_body
                %v277 = vld [vmem:[%s275] sm:$0xff]
                %278 = vst [vmem:[%s276] sm:$0xff] %v277
                %v279 = vld [vmem:[%s275 + $0x8] sm:$0xff]
                %280 = vst [vmem:[%s276 + $0x8] sm:$0xff] %v279
                %v281 = vld [vmem:[%s275 + $0x10] sm:$0xff]
                %282 = vst [vmem:[%s276 + $0x40] sm:$0xff] %v281
                %v283 = vld [vmem:[%s275 + $0x18] sm:$0xff]
                %284 = vst [vmem:[%s276 + $0x48] sm:$0xff] %v283
              $region72: #{upblock_forward.3} parent=66 // loop_footer
                %s274 = sadd.s32 1, %s270
              $region73: #{upblock_forward.3} parent=66 // loop_footer_branch
                %269 = sbr.rel target = $region69
              $region74: #{upblock_forward.3} parent=66 // loop_exit
                _
            $region67: #{upblock_forward.3} parent=62 // pred_fallthru
              _
            // Predicated region
            $region75: #{upblock_forward.3} parent=62 // pred_check
              _
            $region76: #{upblock_forward.3} parent=62 // pred_check_branch
              %286 = sbr.rel target = $region78
            $region77: #{upblock_forward.3} parent=62 // pred_region
              _
            $region78: #{upblock_forward.3} parent=62 // pred_fallthru
              _
          $region63: #{upblock_forward.3} parent=58 // pred_fallthru
            _
          %287 = vnop
        $region59: #{upblock_forward.3} parent=50 // pred_fallthru
          _
      $region51: #{upblock_forward.3} parent=5 // pred_fallthru
        _
      %p288 = scmp.le.s32.totalorder 2, %s9
      // Predicated region
      $region79: #{upblock_forward.3} parent=5 // pred_check
        %p289 = pneg %p288
      $region80: #{upblock_forward.3} parent=5 // pred_check_branch
        %291 = sbr.rel (%p289) target = $region82
      $region81: #{upblock_forward.3} parent=5 // pred_region
        %s292 = ssub.s32 %s9, 2
        // Predicated region
        $region83: #{upblock_forward.3} parent=81 // pred_check
          %p293 = pneg %p122
        $region84: #{upblock_forward.3} parent=81 // pred_check_branch
          %295 = sbr.rel (%p293) target = $region86
        $region85: #{upblock_forward.3} parent=81 // pred_region
          %s296 = sand.u32 %s107, 1
          %s297 = sand.u32 %s107, 1
          %s298 = smul.addr %s297, 32
          %s299 = scalar_lea.vmem [#allocation3], %s298
        $region86: #{upblock_forward.3} parent=81 // pred_fallthru
          _
      $region82: #{upblock_forward.3} parent=5 // pred_fallthru
        _
    $region6: #{upblock_forward.3} parent=1 // loop_footer
      %s13 = sadd.s32 1, %s9
    $region7: #{upblock_forward.3} parent=1 // loop_footer_branch
      %8 = sbr.rel target = $region3
    $region8: #{upblock_forward.3} parent=1 // loop_exit
      _

</llo_original>
